<compile_context>
chip_gen: v7x
topology: tpu7x:2x2x1
jax: 0.10.0
libtpu: 0.0.40
codegen_flags: <defaults>
</compile_context>

<pallas_src>
import functools

import jax
import jax.numpy as jnp
from jax.experimental import pallas as pl
from jax.experimental.pallas import tpu as pltpu


LANE = 128


def _round_up(x, m):
    return ((x + m - 1) // m) * m


def _pick_tile(n_pad):
    for t in (512, 256, 128):
        if n_pad % t == 0:
            return t
    return LANE


def _vmem_limit(*buffer_bytes):
    # Per-kernel estimate + headroom for compiler scratch / rounding.
    est = sum(int(b) for b in buffer_bytes) + (8 << 20)
    # Floor above tiny estimates, cap well under v7x's 64 MiB physical VMEM.
    return int(min(max(est, 16 << 20), 48 << 20))


# ----------------------------- kernels ------------------------------------- #

def _project_kernel(x_ref, w_ref, out_ref):
    """out_tile = X_tile @ W1  (bf16 in, f32 accumulate, bf16 out)."""
    out_ref[...] = jnp.dot(
        x_ref[...], w_ref[...], preferred_element_type=jnp.float32
    ).astype(out_ref.dtype)


def _prop_project_kernel(kt_ref, nv_ref, a_ref, xw_ref, b_ref, w2_ref,
                         out_ref, acc_ref):
    """G_tile = ReLU(sum_k A[i,k] @ XW1[k] + b1) @ W2, K-tiled + tile-skipped."""
    i = pl.program_id(0)
    k = pl.program_id(1)

    @pl.when(k == 0)
    def _():
        acc_ref[...] = jnp.zeros_like(acc_ref)

    # Only accumulate on real (nonzero-tile) K steps; padded steps reuse the
    # previous block index so their DMA is skipped by the pipeline.
    @pl.when(k < nv_ref[i])
    def _():
        acc_ref[...] += jnp.dot(a_ref[...], xw_ref[...],
                                preferred_element_type=jnp.float32)

    @pl.when(k == pl.num_programs(1) - 1)
    def _():
        h = jnp.maximum(acc_ref[...] + b_ref[...], 0.0).astype(jnp.bfloat16)
        out_ref[...] = jnp.dot(
            h, w2_ref[...], preferred_element_type=jnp.float32
        ).astype(out_ref.dtype)


def _prop_pool_fc_kernel(kt_ref, nv_ref, a_ref, g_ref, b_ref, p_ref,
                         wfc_ref, bfc_ref, out_ref, h_acc_ref, pool_acc_ref,
                         *, tm):
    """pooled += P[:, i] @ ReLU(sum_k A[i,k] @ G[k] + b2); finalize with FC."""
    i = pl.program_id(0)
    k = pl.program_id(1)
    last_i = pl.num_programs(0) - 1
    last_k = pl.num_programs(1) - 1

    @pl.when(jnp.logical_and(i == 0, k == 0))
    def _():
        pool_acc_ref[...] = jnp.zeros_like(pool_acc_ref)

    @pl.when(k == 0)
    def _():
        h_acc_ref[...] = jnp.zeros_like(h_acc_ref)

    @pl.when(k < nv_ref[i])
    def _():
        h_acc_ref[...] += jnp.dot(a_ref[...], g_ref[...],
                                  preferred_element_type=jnp.float32)

    @pl.when(k == last_k)
    def _():
        h = jnp.maximum(h_acc_ref[...] + b_ref[...], 0.0).astype(jnp.bfloat16)
        col0 = pl.multiple_of(i * tm, tm)
        p_tile = p_ref[:, pl.ds(col0, tm)]          # resident P, lane-aligned slice
        pool_acc_ref[...] += jnp.dot(p_tile, h,
                                     preferred_element_type=jnp.float32)

    @pl.when(jnp.logical_and(i == last_i, k == last_k))
    def _():
        pooled = pool_acc_ref[...].astype(jnp.bfloat16)
        out_ref[...] = (
            jnp.dot(pooled, wfc_ref[...], preferred_element_type=jnp.float32)
            + bfc_ref[...]
        )


# ----------------------------- graph glue (plain JAX) ----------------------- #

def build_normalized_adjacency(edge_index, num_nodes, n_pad, dtype=jnp.bfloat16):
    """D^-1/2 (A + I) D^-1/2 (PyG GCNConv default), built padded + in `dtype`."""
    src, dst = edge_index[0], edge_index[1]
    a = jnp.zeros((n_pad, n_pad), jnp.float32)
    a = a.at[dst, src].add(1.0)
    diag = jnp.arange(num_nodes)
    a = a.at[diag, diag].add(1.0)                       # self-loops on real nodes
    deg = a.sum(axis=1)
    d_inv_sqrt = jnp.where(deg > 0.0, 1.0 / jnp.sqrt(jnp.maximum(deg, 1.0)), 0.0)
    return (d_inv_sqrt[:, None] * a * d_inv_sqrt[None, :]).astype(dtype)


def build_mean_pool_matrix(batch, num_graphs, b_pad, n_pad, dtype=jnp.bfloat16):
    """P[b, i] = 1/|graph b| if node i belongs to graph b, built padded."""
    n = batch.shape[0]
    onehot = jnp.zeros((b_pad, n_pad), jnp.float32)
    onehot = onehot.at[batch, jnp.arange(n)].set(1.0)
    counts = jnp.maximum(onehot.sum(axis=1, keepdims=True), 1.0)
    return (onehot / counts).astype(dtype)


def build_block_sparsity(edge_index, num_nodes, n_pad, tm, tk):
    """Per-row-tile list of nonzero A_hat column tiles (from edge_index only).

    Returns kt [R, C] int32 (nonzero column-tile ids first, padded entries
    repeat the last valid id so the pipeline skips their DMA) and nvalid [R].
    """
    r_tiles, c_tiles = n_pad // tm, n_pad // tk
    src, dst = edge_index[0], edge_index[1]
    nz = jnp.zeros((r_tiles, c_tiles), jnp.int32)
    nz = nz.at[dst // tm, src // tk].max(1)             # A[dst, src] edges
    diag = jnp.arange(num_nodes)
    nz = nz.at[diag // tm, diag // tk].max(1)           # self-loops
    nvalid = nz.sum(axis=1).astype(jnp.int32)
    order = jnp.argsort(-nz, axis=1).astype(jnp.int32)  # stable: nonzero first
    last = order[jnp.arange(r_tiles), jnp.maximum(nvalid - 1, 0)]
    pos = jnp.arange(c_tiles, dtype=jnp.int32)[None, :]
    kt = jnp.where(pos < nvalid[:, None], order, last[:, None]).astype(jnp.int32)
    return kt, nvalid


# ----------------------------- forward -------------------------------------- #

@functools.partial(jax.jit, static_argnames=("num_graphs",))
def gcn_forward(x, edge_index, batch, w1, b1, w2, b2, wfc, bfc, *, num_graphs):
    bf16, f32 = jnp.bfloat16, jnp.float32
    n, cin = x.shape
    hid = w1.shape[1]
    ncls = wfc.shape[1]

    n_pad = _round_up(max(n, 1), LANE)
    tm = tk = _pick_tile(n_pad)
    cin_pad = _round_up(cin, LANE)
    h_pad = _round_up(hid, LANE)
    c_pad = _round_up(ncls, LANE)
    b_pad = _round_up(max(num_graphs, 1), 16)           # bf16 sublane pack
    n_row_tiles = n_pad // tm
    n_col_tiles = n_pad // tk

    # Build A_hat / P directly padded + bf16 (no extra pad/cast pass); build the
    # block-sparsity tables straight from edge_index (no dense A_hat read).
    a_p = build_normalized_adjacency(edge_index, n, n_pad, dtype=bf16)
    p_p = build_mean_pool_matrix(batch, num_graphs, b_pad, n_pad, dtype=bf16)
    kt, nv = build_block_sparsity(edge_index, n, n_pad, tm, tk)

    x_p = jnp.pad(x, ((0, n_pad - n), (0, cin_pad - cin))).astype(bf16)
    w1_p = jnp.pad(w1, ((0, cin_pad - cin), (0, h_pad - hid))).astype(bf16)
    w2_p = jnp.pad(w2, ((0, h_pad - hid), (0, h_pad - hid))).astype(bf16)
    wfc_p = jnp.pad(wfc, ((0, h_pad - hid), (0, c_pad - ncls))).astype(bf16)
    b1_p = jnp.pad(b1, (0, h_pad - hid)).astype(f32).reshape(1, h_pad)
    b2_p = jnp.pad(b2, (0, h_pad - hid)).astype(f32).reshape(1, h_pad)
    bfc_p = jnp.pad(bfc, (0, c_pad - ncls)).astype(f32).reshape(1, c_pad)

    bfb = 2  # bf16 bytes

    # ---- 1) XW1 = X @ W1 (row-tiled, parallel) ----
    vlim1 = _vmem_limit(2 * tm * cin_pad * bfb,
                        2 * cin_pad * h_pad * bfb,
                        2 * tm * h_pad * bfb)
    xw1 = pl.pallas_call(
        _project_kernel,
        out_shape=jax.ShapeDtypeStruct((n_pad, h_pad), bf16),
        grid_spec=pltpu.PrefetchScalarGridSpec(
            num_scalar_prefetch=0,
            grid=(n_row_tiles,),
            in_specs=[pl.BlockSpec((tm, cin_pad), lambda i: (i, 0)),
                      pl.BlockSpec((cin_pad, h_pad), lambda i: (0, 0))],
            out_specs=pl.BlockSpec((tm, h_pad), lambda i: (i, 0))),
        compiler_params=pltpu.CompilerParams(
            dimension_semantics=("parallel",), vmem_limit_bytes=vlim1),
        cost_estimate=pl.CostEstimate(
            flops=2 * n_pad * cin_pad * h_pad,
            transcendentals=0,
            bytes_accessed=bfb * (n_pad * cin_pad + cin_pad * h_pad
                                  + n_pad * h_pad)),
    )(x_p, w1_p)

    # ---- 2) G = ReLU(A @ XW1 + b1) @ W2 (row-tiled parallel, K-tiled arbitrary) ----
    vlim2 = _vmem_limit(2 * tm * tk * bfb,            # A_hat tile (double-buffered)
                        2 * tk * h_pad * bfb,         # XW1 K-tile
                        2 * h_pad * 4,                # bias
                        2 * h_pad * h_pad * bfb,      # W2
                        2 * tm * h_pad * bfb,         # output tile
                        tm * h_pad * 4)               # f32 accumulator scratch
    g = pl.pallas_call(
        _prop_project_kernel,
        out_shape=jax.ShapeDtypeStruct((n_pad, h_pad), bf16),
        grid_spec=pltpu.PrefetchScalarGridSpec(
            num_scalar_prefetch=2,
            grid=(n_row_tiles, n_col_tiles),
            in_specs=[
                pl.BlockSpec((tm, tk), lambda i, k, kt, nv: (i, kt[i, k])),
                pl.BlockSpec((tk, h_pad), lambda i, k, kt, nv: (kt[i, k], 0)),
                pl.BlockSpec((1, h_pad), lambda i, k, kt, nv: (0, 0)),
                pl.BlockSpec((h_pad, h_pad), lambda i, k, kt, nv: (0, 0)),
            ],
            out_specs=pl.BlockSpec((tm, h_pad), lambda i, k, kt, nv: (i, 0)),
            scratch_shapes=[pltpu.VMEM((tm, h_pad), f32)]),
        compiler_params=pltpu.CompilerParams(
            dimension_semantics=("parallel", "arbitrary"),
            vmem_limit_bytes=vlim2),
        cost_estimate=pl.CostEstimate(
            flops=2 * n_pad * n_pad * h_pad + 2 * n_pad * h_pad * h_pad,
            transcendentals=0,
            bytes_accessed=bfb * (n_pad * n_pad + 2 * n_pad * h_pad
                                  + h_pad * h_pad)),
    )(kt, nv, a_p, xw1, b1_p, w2_p)

    # ---- 3) out = (P @ ReLU(A @ G + b2)) @ Wfc + bfc (K-tiled double reduction) ----
    vlim3 = _vmem_limit(2 * tm * tk * bfb,            # A_hat tile
                        2 * tk * h_pad * bfb,         # G K-tile
                        2 * h_pad * 4,                # bias
                        2 * b_pad * n_pad * bfb,      # resident P
                        2 * h_pad * c_pad * bfb,      # Wfc
                        2 * c_pad * 4,                # bfc
                        2 * b_pad * c_pad * 4,        # output
                        tm * h_pad * 4,               # f32 H accumulator
                        b_pad * h_pad * 4)            # f32 pooled accumulator
    out_pad = pl.pallas_call(
        functools.partial(_prop_pool_fc_kernel, tm=tm),
        out_shape=jax.ShapeDtypeStruct((b_pad, c_pad), f32),
        grid_spec=pltpu.PrefetchScalarGridSpec(
            num_scalar_prefetch=2,
            grid=(n_row_tiles, n_col_tiles),
            in_specs=[
                pl.BlockSpec((tm, tk), lambda i, k, kt, nv: (i, kt[i, k])),
                pl.BlockSpec((tk, h_pad), lambda i, k, kt, nv: (kt[i, k], 0)),
                pl.BlockSpec((1, h_pad), lambda i, k, kt, nv: (0, 0)),
                pl.BlockSpec((b_pad, n_pad), lambda i, k, kt, nv: (0, 0)),
                pl.BlockSpec((h_pad, c_pad), lambda i, k, kt, nv: (0, 0)),
                pl.BlockSpec((1, c_pad), lambda i, k, kt, nv: (0, 0)),
            ],
            out_specs=pl.BlockSpec((b_pad, c_pad), lambda i, k, kt, nv: (0, 0)),
            scratch_shapes=[pltpu.VMEM((tm, h_pad), f32),
                            pltpu.VMEM((b_pad, h_pad), f32)]),
        compiler_params=pltpu.CompilerParams(
            dimension_semantics=("arbitrary", "arbitrary"),
            vmem_limit_bytes=vlim3),
        cost_estimate=pl.CostEstimate(
            flops=(2 * n_pad * n_pad * h_pad
                   + 2 * b_pad * n_pad * h_pad
                   + 2 * b_pad * h_pad * c_pad),
            transcendentals=0,
            bytes_accessed=bfb * (n_pad * n_pad + n_pad * h_pad
                                  + b_pad * n_pad + h_pad * c_pad)
                           + 4 * b_pad * c_pad),
    )(kt, nv, a_p, g, b2_p, p_p, wfc_p, bfc_p)

    return out_pad[:num_graphs, :ncls]


# ----------------------------- demo / test ---------------------------------- #

if __name__ == "__main__":
    # Small deterministic example: 2 graphs of 8 nodes each.
    N = 16            # total nodes
    IN_CH = 8         # in_channels
    HIDDEN = 32       # hidden_channels
    NUM_CLASSES = 4   # num_classes
    B = 2             # number of graphs in the batch
    E = 40            # number of directed edges

    key = jax.random.PRNGKey(0)
    k_x, k_src, k_dst, k_w1, k_w2, k_wfc = jax.random.split(key, 6)

    # data.x, data.edge_index, data.batch
    x = jax.random.normal(k_x, (N, IN_CH), dtype=jnp.float32)
    src = jax.random.randint(k_src, (E,), 0, N)
    dst = jax.random.randint(k_dst, (E,), 0, N)
    edge_index = jnp.stack([src, dst], axis=0)           # [2, E]
    batch = jnp.concatenate([jnp.zeros(N // 2, jnp.int32),
                             jnp.ones(N - N // 2, jnp.int32)])

    # Deterministic parameter init (glorot-ish scaling).
    w1 = jax.random.normal(k_w1, (IN_CH, HIDDEN), jnp.float32) / jnp.sqrt(IN_CH)
    b1 = jnp.zeros((HIDDEN,), jnp.float32)
    w2 = jax.random.normal(k_w2, (HIDDEN, HIDDEN), jnp.float32) / jnp.sqrt(HIDDEN)
    b2 = jnp.zeros((HIDDEN,), jnp.float32)
    wfc = jax.random.normal(k_wfc, (HIDDEN, NUM_CLASSES), jnp.float32) / jnp.sqrt(HIDDEN)
    bfc = jnp.zeros((NUM_CLASSES,), jnp.float32)

    out = gcn_forward(x, edge_index, batch, w1, b1, w2, b2, wfc, bfc,
                      num_graphs=B)
    out = jax.block_until_ready(out)

    # Pure-JAX reference mimicking the kernel's bf16-input / f32-accumulate path.
    bf, f32 = jnp.bfloat16, jnp.float32
    n_pad = _round_up(N, LANE)
    b_pad = _round_up(B, 16)
    a_bf = build_normalized_adjacency(edge_index, N, n_pad, dtype=bf)[:N, :N]
    p_bf = build_mean_pool_matrix(batch, B, b_pad, n_pad, dtype=bf)[:B, :N]

    xw1_r = jnp.dot(x.astype(bf), w1.astype(bf),
                    preferred_element_type=f32).astype(bf)
    h1_r = jnp.maximum(jnp.dot(a_bf, xw1_r,
                               preferred_element_type=f32) + b1, 0.0).astype(bf)
    g_r = jnp.dot(h1_r, w2.astype(bf), preferred_element_type=f32).astype(bf)
    h2_r = jnp.maximum(jnp.dot(a_bf, g_r,
                               preferred_element_type=f32) + b2, 0.0).astype(bf)
    pooled_r = jnp.dot(p_bf, h2_r, preferred_element_type=f32).astype(bf)
    ref = jnp.dot(pooled_r, wfc.astype(bf), preferred_element_type=f32) + bfc

    assert out.shape == (B, NUM_CLASSES)
    assert jnp.allclose(out, ref, atol=1e-2, rtol=1e-2)

    print("KERNEL_OK")
</pallas_src>

<mosaic_0001>
module attributes {stable_mosaic.version = 11 : i64} {
  func.func private @main(%arg0: i32) attributes {dimension_semantics = [#tpu.dimension_semantics<core_parallel>], iteration_bounds = array<i64: 2>, tpu.core_type = #tpu.core_type<sc_scalar_subcore>, window_params = []} {
    return
  }
}

module attributes {stable_mosaic.version = 11 : i64} {
  func.func private @main(%arg0: i32) attributes {dimension_semantics = [#tpu.dimension_semantics<core_parallel>], iteration_bounds = array<i64: 2>, tpu.core_type = #tpu.core_type<sc_scalar_subcore>, window_params = []} {
    return
  }
}

module attributes {stable_mosaic.version = 11 : i64} {
  func.func @_project_kernel(%arg0: i32, %arg1: memref<128x128xbf16, #tpu.memory_space<vmem>>, %arg2: memref<128x128xbf16, #tpu.memory_space<vmem>>, %arg3: memref<128x128xbf16, #tpu.memory_space<vmem>>) attributes {dimension_semantics = [#tpu.dimension_semantics<parallel>], iteration_bounds = array<i64: 1>, scalar_prefetch = 0 : i64, scratch_operands = 0 : i64, tpu.core_type = #tpu.core_type<tc>, window_params = [{transform_indices = @transform_0, window_bounds = array<i64: 128, 128>}, {pipeline_mode = #tpu.pipeline_mode<synchronous>, transform_indices = @transform_1, window_bounds = array<i64: 128, 128>}, {transform_indices = @transform_2, window_bounds = array<i64: 128, 128>}]} {
    %c0 = arith.constant 0 : index
    %c0_0 = arith.constant 0 : index
    %0 = vector.load %arg1[%c0, %c0_0] : memref<128x128xbf16, #tpu.memory_space<vmem>>, vector<128x128xbf16>
    %c0_1 = arith.constant 0 : index
    %c0_2 = arith.constant 0 : index
    %1 = vector.load %arg2[%c0_1, %c0_2] : memref<128x128xbf16, #tpu.memory_space<vmem>>, vector<128x128xbf16>
    %cst = arith.constant dense<0.000000e+00> : vector<128x128xf32>
    %2 = tpu.matmul %0, %1, %cst {dimension_numbers = #tpu.dot_dimension_numbers<[1], [0], [0], [1], [0, 0, 1, 1], [], []>} : vector<128x128xbf16>, vector<128x128xbf16>, vector<128x128xf32> -> vector<128x128xf32>
    %3 = arith.truncf %2 : vector<128x128xf32> to vector<128x128xbf16>
    %c0_3 = arith.constant 0 : index
    %c0_4 = arith.constant 0 : index
    %4 = vector.load %arg3[%c0_3, %c0_4] : memref<128x128xbf16, #tpu.memory_space<vmem>>, vector<128x128xbf16>
    tpu.vector_store %arg3[%c0_3, %c0_4], %3 {strides = array<i32>} : memref<128x128xbf16, #tpu.memory_space<vmem>>, vector<128x128xbf16>,
    return
  }
  func.func @transform_0(%arg0: i32) -> (i32, i32) {
    %c0_i32 = arith.constant 0 : i32
    %c0_i32_0 = arith.constant 0 : i32
    return %arg0, %c0_i32 : i32, i32
  }
  func.func @transform_1(%arg0: i32) -> (i32, i32) {
    %c0_i32 = arith.constant 0 : i32
    %c0_i32_0 = arith.constant 0 : i32
    %c0_i32_1 = arith.constant 0 : i32
    return %c0_i32, %c0_i32_0 : i32, i32
  }
  func.func @transform_2(%arg0: i32) -> (i32, i32) {
    %c0_i32 = arith.constant 0 : i32
    %c0_i32_0 = arith.constant 0 : i32
    return %arg0, %c0_i32 : i32, i32
  }
}

module attributes {stable_mosaic.version = 11 : i64} {
  func.func @_prop_pool_fc_kernel(%arg0: i32, %arg1: i32, %arg2: memref<1x1xi32, #tpu.memory_space<smem>>, %arg3: memref<1xi32, #tpu.memory_space<smem>>, %arg4: memref<128x128xbf16, #tpu.memory_space<vmem>>, %arg5: memref<128x128xbf16, #tpu.memory_space<vmem>>, %arg6: memref<1x128xf32, #tpu.memory_space<vmem>>, %arg7: memref<16x128xbf16, #tpu.memory_space<vmem>>, %arg8: memref<128x128xbf16, #tpu.memory_space<vmem>>, %arg9: memref<1x128xf32, #tpu.memory_space<vmem>>, %arg10: memref<16x128xf32, #tpu.memory_space<vmem>>, %arg11: memref<128x128xf32, #tpu.memory_space<vmem>>, %arg12: memref<16x128xf32, #tpu.memory_space<vmem>>) attributes {dimension_semantics = [#tpu.dimension_semantics<arbitrary>, #tpu.dimension_semantics<arbitrary>], iteration_bounds = array<i64: 1, 1>, scalar_prefetch = 2 : i64, scratch_operands = 2 : i64, tpu.core_type = #tpu.core_type<tc>, window_params = [{transform_indices = @transform_0, window_bounds = array<i64: 128, 128>}, {transform_indices = @transform_1, window_bounds = array<i64: 128, 128>}, {pipeline_mode = #tpu.pipeline_mode<synchronous>, transform_indices = @transform_2, window_bounds = array<i64: 1, 128>}, {pipeline_mode = #tpu.pipeline_mode<synchronous>, transform_indices = @transform_3, window_bounds = array<i64: 16, 128>}, {pipeline_mode = #tpu.pipeline_mode<synchronous>, transform_indices = @transform_4, window_bounds = array<i64: 128, 128>}, {pipeline_mode = #tpu.pipeline_mode<synchronous>, transform_indices = @transform_5, window_bounds = array<i64: 1, 128>}, {pipeline_mode = #tpu.pipeline_mode<synchronous>, transform_indices = @transform_6, window_bounds = array<i64: 16, 128>}]} {
    %c0_i32 = arith.constant 0 : i32
    %0 = arith.cmpi eq, %arg0, %c0_i32 : i32
    %c0_i32_0 = arith.constant 0 : i32
    %1 = arith.cmpi eq, %arg1, %c0_i32_0 : i32
    %2 = arith.andi %0, %1 : i1
    %3 = arith.extui %2 : i1 to i32
    %c0_i32_1 = arith.constant 0 : i32
    %4 = arith.cmpi ne, %3, %c0_i32_1 : i32
    scf.if %4 {
      %cst = arith.constant 0.000000e+00 : f32
      %21 = vector.broadcast %cst : f32 to vector<16x128xf32>
      %c0 = arith.constant 0 : index
      %c0_10 = arith.constant 0 : index
      %22 = vector.load %arg12[%c0, %c0_10] : memref<16x128xf32, #tpu.memory_space<vmem>>, vector<16x128xf32>
      tpu.vector_store %arg12[%c0, %c0_10], %21 {strides = array<i32>} : memref<16x128xf32, #tpu.memory_space<vmem>>, vector<16x128xf32>,
    } else {
    }
    %c0_i32_2 = arith.constant 0 : i32
    %5 = arith.cmpi eq, %arg1, %c0_i32_2 : i32
    %6 = arith.extui %5 : i1 to i32
    %c0_i32_3 = arith.constant 0 : i32
    %7 = arith.cmpi ne, %6, %c0_i32_3 : i32
    scf.if %7 {
      %cst = arith.constant 0.000000e+00 : f32
      %21 = vector.broadcast %cst : f32 to vector<128x128xf32>
      %c0 = arith.constant 0 : index
      %c0_10 = arith.constant 0 : index
      %22 = vector.load %arg11[%c0, %c0_10] : memref<128x128xf32, #tpu.memory_space<vmem>>, vector<128x128xf32>
      tpu.vector_store %arg11[%c0, %c0_10], %21 {strides = array<i32>} : memref<128x128xf32, #tpu.memory_space<vmem>>, vector<128x128xf32>,
    } else {
    }
    %8 = arith.index_cast %arg0 : i32 to index
    %9 = memref.load %arg3[%8] : memref<1xi32, #tpu.memory_space<smem>>
    %10 = arith.cmpi slt, %arg1, %9 : i32
    %11 = arith.extui %10 : i1 to i32
    %c0_i32_4 = arith.constant 0 : i32
    %12 = arith.cmpi ne, %11, %c0_i32_4 : i32
    scf.if %12 {
      %c0 = arith.constant 0 : index
      %c0_10 = arith.constant 0 : index
      %21 = vector.load %arg11[%c0, %c0_10] : memref<128x128xf32, #tpu.memory_space<vmem>>, vector<128x128xf32>
      %c0_11 = arith.constant 0 : index
      %c0_12 = arith.constant 0 : index
      %22 = vector.load %arg4[%c0_11, %c0_12] : memref<128x128xbf16, #tpu.memory_space<vmem>>, vector<128x128xbf16>
      %c0_13 = arith.constant 0 : index
      %c0_14 = arith.constant 0 : index
      %23 = vector.load %arg5[%c0_13, %c0_14] : memref<128x128xbf16, #tpu.memory_space<vmem>>, vector<128x128xbf16>
      %cst = arith.constant dense<0.000000e+00> : vector<128x128xf32>
      %24 = tpu.matmul %22, %23, %cst {dimension_numbers = #tpu.dot_dimension_numbers<[1], [0], [0], [1], [0, 0, 1, 1], [], []>} : vector<128x128xbf16>, vector<128x128xbf16>, vector<128x128xf32> -> vector<128x128xf32>
      %25 = arith.addf %21, %24 : vector<128x128xf32>
      %c0_15 = arith.constant 0 : index
      %c0_16 = arith.constant 0 : index
      %26 = vector.load %arg11[%c0_15, %c0_16] : memref<128x128xf32, #tpu.memory_space<vmem>>, vector<128x128xf32>
      tpu.vector_store %arg11[%c0_15, %c0_16], %25 {strides = array<i32>} : memref<128x128xf32, #tpu.memory_space<vmem>>, vector<128x128xf32>,
    } else {
    }
    %c0_i32_5 = arith.constant 0 : i32
    %13 = arith.cmpi eq, %arg1, %c0_i32_5 : i32
    %14 = arith.extui %13 : i1 to i32
    %c0_i32_6 = arith.constant 0 : i32
    %15 = arith.cmpi ne, %14, %c0_i32_6 : i32
    scf.if %15 {
      %c0 = arith.constant 0 : index
      %c0_10 = arith.constant 0 : index
      %21 = vector.load %arg11[%c0, %c0_10] : memref<128x128xf32, #tpu.memory_space<vmem>>, vector<128x128xf32>
      %c0_11 = arith.constant 0 : index
      %c0_12 = arith.constant 0 : index
      %22 = vector.load %arg6[%c0_11, %c0_12] : memref<1x128xf32, #tpu.memory_space<vmem>>, vector<1x128xf32>
      %23 = vector.broadcast %22 : vector<1x128xf32> to vector<128x128xf32>
      %24 = arith.addf %21, %23 : vector<128x128xf32>
      %cst = arith.constant 0.000000e+00 : f32
      %25 = vector.broadcast %cst : f32 to vector<128x128xf32>
      %26 = arith.maximumf %24, %25 : vector<128x128xf32>
      %27 = arith.truncf %26 : vector<128x128xf32> to vector<128x128xbf16>
      %c128_i32 = arith.constant 128 : i32
      %28 = arith.muli %arg0, %c128_i32 : i32
      %29 = tpu.assume_multiple %28, 128 : i32
      %c0_13 = arith.constant 0 : index
      %30 = arith.index_cast %29 : i32 to index
      %31 = vector.load %arg7[%c0_13, %30] : memref<16x128xbf16, #tpu.memory_space<vmem>>, vector<16x128xbf16>
      %c0_14 = arith.constant 0 : index
      %c0_15 = arith.constant 0 : index
      %32 = vector.load %arg12[%c0_14, %c0_15] : memref<16x128xf32, #tpu.memory_space<vmem>>, vector<16x128xf32>
      %cst_16 = arith.constant dense<0.000000e+00> : vector<16x128xf32>
      %33 = tpu.matmul %31, %27, %cst_16 {dimension_numbers = #tpu.dot_dimension_numbers<[1], [0], [0], [1], [0, 0, 1, 1], [], []>} : vector<16x128xbf16>, vector<128x128xbf16>, vector<16x128xf32> -> vector<16x128xf32>
      %34 = arith.addf %32, %33 : vector<16x128xf32>
      %c0_17 = arith.constant 0 : index
      %c0_18 = arith.constant 0 : index
      %35 = vector.load %arg12[%c0_17, %c0_18] : memref<16x128xf32, #tpu.memory_space<vmem>>, vector<16x128xf32>
      tpu.vector_store %arg12[%c0_17, %c0_18], %34 {strides = array<i32>} : memref<16x128xf32, #tpu.memory_space<vmem>>, vector<16x128xf32>,
    } else {
    }
    %c0_i32_7 = arith.constant 0 : i32
    %16 = arith.cmpi eq, %arg0, %c0_i32_7 : i32
    %c0_i32_8 = arith.constant 0 : i32
    %17 = arith.cmpi eq, %arg1, %c0_i32_8 : i32
    %18 = arith.andi %16, %17 : i1
    %19 = arith.extui %18 : i1 to i32
    %c0_i32_9 = arith.constant 0 : i32
    %20 = arith.cmpi ne, %19, %c0_i32_9 : i32
    scf.if %20 {
      %c0 = arith.constant 0 : index
      %c0_10 = arith.constant 0 : index
      %21 = vector.load %arg12[%c0, %c0_10] : memref<16x128xf32, #tpu.memory_space<vmem>>, vector<16x128xf32>
      %22 = arith.truncf %21 : vector<16x128xf32> to vector<16x128xbf16>
      %c0_11 = arith.constant 0 : index
      %c0_12 = arith.constant 0 : index
      %23 = vector.load %arg8[%c0_11, %c0_12] : memref<128x128xbf16, #tpu.memory_space<vmem>>, vector<128x128xbf16>
      %cst = arith.constant dense<0.000000e+00> : vector<16x128xf32>
      %24 = tpu.matmul %22, %23, %cst {dimension_numbers = #tpu.dot_dimension_numbers<[1], [0], [0], [1], [0, 0, 1, 1], [], []>} : vector<16x128xbf16>, vector<128x128xbf16>, vector<16x128xf32> -> vector<16x128xf32>
      %c0_13 = arith.constant 0 : index
      %c0_14 = arith.constant 0 : index
      %25 = vector.load %arg9[%c0_13, %c0_14] : memref<1x128xf32, #tpu.memory_space<vmem>>, vector<1x128xf32>
      %26 = vector.broadcast %25 : vector<1x128xf32> to vector<16x128xf32>
      %27 = arith.addf %24, %26 : vector<16x128xf32>
      %c0_15 = arith.constant 0 : index
      %c0_16 = arith.constant 0 : index
      %28 = vector.load %arg10[%c0_15, %c0_16] : memref<16x128xf32, #tpu.memory_space<vmem>>, vector<16x128xf32>
      tpu.vector_store %arg10[%c0_15, %c0_16], %27 {strides = array<i32>} : memref<16x128xf32, #tpu.memory_space<vmem>>, vector<16x128xf32>,
    } else {
    }
    return
  }
  func.func @transform_0(%arg0: i32, %arg1: i32, %arg2: memref<1x1xi32, #tpu.memory_space<smem>>, %arg3: memref<1xi32, #tpu.memory_space<smem>>) -> (i32, i32) {
    %0 = arith.index_cast %arg0 : i32 to index
    %1 = arith.index_cast %arg1 : i32 to index
    %2 = memref.load %arg2[%0, %1] : memref<1x1xi32, #tpu.memory_space<smem>>
    %c0_i32 = arith.constant 0 : i32
    return %arg0, %2 : i32, i32
  }
  func.func @transform_1(%arg0: i32, %arg1: i32, %arg2: memref<1x1xi32, #tpu.memory_space<smem>>, %arg3: memref<1xi32, #tpu.memory_space<smem>>) -> (i32, i32) {
    %0 = arith.index_cast %arg0 : i32 to index
    %1 = arith.index_cast %arg1 : i32 to index
    %2 = memref.load %arg2[%0, %1] : memref<1x1xi32, #tpu.memory_space<smem>>
    %c0_i32 = arith.constant 0 : i32
    %c0_i32_0 = arith.constant 0 : i32
    return %2, %c0_i32 : i32, i32
  }
  func.func @transform_2(%arg0: i32, %arg1: i32, %arg2: memref<1x1xi32, #tpu.memory_space<smem>>, %arg3: memref<1xi32, #tpu.memory_space<smem>>) -> (i32, i32) {
    %c0_i32 = arith.constant 0 : i32
    %c0_i32_0 = arith.constant 0 : i32
    %c0_i32_1 = arith.constant 0 : i32
    return %c0_i32, %c0_i32_0 : i32, i32
  }
  func.func @transform_3(%arg0: i32, %arg1: i32, %arg2: memref<1x1xi32, #tpu.memory_space<smem>>, %arg3: memref<1xi32, #tpu.memory_space<smem>>) -> (i32, i32) {
    %c0_i32 = arith.constant 0 : i32
    %c0_i32_0 = arith.constant 0 : i32
    %c0_i32_1 = arith.constant 0 : i32
    return %c0_i32, %c0_i32_0 : i32, i32
  }
  func.func @transform_4(%arg0: i32, %arg1: i32, %arg2: memref<1x1xi32, #tpu.memory_space<smem>>, %arg3: memref<1xi32, #tpu.memory_space<smem>>) -> (i32, i32) {
    %c0_i32 = arith.constant 0 : i32
    %c0_i32_0 = arith.constant 0 : i32
    %c0_i32_1 = arith.constant 0 : i32
    return %c0_i32, %c0_i32_0 : i32, i32
  }
  func.func @transform_5(%arg0: i32, %arg1: i32, %arg2: memref<1x1xi32, #tpu.memory_space<smem>>, %arg3: memref<1xi32, #tpu.memory_space<smem>>) -> (i32, i32) {
    %c0_i32 = arith.constant 0 : i32
    %c0_i32_0 = arith.constant 0 : i32
    %c0_i32_1 = arith.constant 0 : i32
    return %c0_i32, %c0_i32_0 : i32, i32
  }
  func.func @transform_6(%arg0: i32, %arg1: i32, %arg2: memref<1x1xi32, #tpu.memory_space<smem>>, %arg3: memref<1xi32, #tpu.memory_space<smem>>) -> (i32, i32) {
    %c0_i32 = arith.constant 0 : i32
    %c0_i32_0 = arith.constant 0 : i32
    %c0_i32_1 = arith.constant 0 : i32
    return %c0_i32, %c0_i32_0 : i32, i32
  }
}

module attributes {stable_mosaic.version = 11 : i64} {
  func.func @_prop_project_kernel(%arg0: i32, %arg1: i32, %arg2: memref<1x1xi32, #tpu.memory_space<smem>>, %arg3: memref<1xi32, #tpu.memory_space<smem>>, %arg4: memref<128x128xbf16, #tpu.memory_space<vmem>>, %arg5: memref<128x128xbf16, #tpu.memory_space<vmem>>, %arg6: memref<1x128xf32, #tpu.memory_space<vmem>>, %arg7: memref<128x128xbf16, #tpu.memory_space<vmem>>, %arg8: memref<128x128xbf16, #tpu.memory_space<vmem>>, %arg9: memref<128x128xf32, #tpu.memory_space<vmem>>) attributes {dimension_semantics = [#tpu.dimension_semantics<parallel>, #tpu.dimension_semantics<arbitrary>], iteration_bounds = array<i64: 1, 1>, scalar_prefetch = 2 : i64, scratch_operands = 1 : i64, tpu.core_type = #tpu.core_type<tc>, window_params = [{transform_indices = @transform_0, window_bounds = array<i64: 128, 128>}, {transform_indices = @transform_1, window_bounds = array<i64: 128, 128>}, {pipeline_mode = #tpu.pipeline_mode<synchronous>, transform_indices = @transform_2, window_bounds = array<i64: 1, 128>}, {pipeline_mode = #tpu.pipeline_mode<synchronous>, transform_indices = @transform_3, window_bounds = array<i64: 128, 128>}, {transform_indices = @transform_4, window_bounds = array<i64: 128, 128>}]} {
    %c0_i32 = arith.constant 0 : i32
    %0 = arith.cmpi eq, %arg1, %c0_i32 : i32
    %1 = arith.extui %0 : i1 to i32
    %c0_i32_0 = arith.constant 0 : i32
    %2 = arith.cmpi ne, %1, %c0_i32_0 : i32
    scf.if %2 {
      %cst = arith.constant 0.000000e+00 : f32
      %11 = vector.broadcast %cst : f32 to vector<128x128xf32>
      %c0 = arith.constant 0 : index
      %c0_4 = arith.constant 0 : index
      %12 = vector.load %arg9[%c0, %c0_4] : memref<128x128xf32, #tpu.memory_space<vmem>>, vector<128x128xf32>
      tpu.vector_store %arg9[%c0, %c0_4], %11 {strides = array<i32>} : memref<128x128xf32, #tpu.memory_space<vmem>>, vector<128x128xf32>,
    } else {
    }
    %3 = arith.index_cast %arg0 : i32 to index
    %4 = memref.load %arg3[%3] : memref<1xi32, #tpu.memory_space<smem>>
    %5 = arith.cmpi slt, %arg1, %4 : i32
    %6 = arith.extui %5 : i1 to i32
    %c0_i32_1 = arith.constant 0 : i32
    %7 = arith.cmpi ne, %6, %c0_i32_1 : i32
    scf.if %7 {
      %c0 = arith.constant 0 : index
      %c0_4 = arith.constant 0 : index
      %11 = vector.load %arg9[%c0, %c0_4] : memref<128x128xf32, #tpu.memory_space<vmem>>, vector<128x128xf32>
      %c0_5 = arith.constant 0 : index
      %c0_6 = arith.constant 0 : index
      %12 = vector.load %arg4[%c0_5, %c0_6] : memref<128x128xbf16, #tpu.memory_space<vmem>>, vector<128x128xbf16>
      %c0_7 = arith.constant 0 : index
      %c0_8 = arith.constant 0 : index
      %13 = vector.load %arg5[%c0_7, %c0_8] : memref<128x128xbf16, #tpu.memory_space<vmem>>, vector<128x128xbf16>
      %cst = arith.constant dense<0.000000e+00> : vector<128x128xf32>
      %14 = tpu.matmul %12, %13, %cst {dimension_numbers = #tpu.dot_dimension_numbers<[1], [0], [0], [1], [0, 0, 1, 1], [], []>} : vector<128x128xbf16>, vector<128x128xbf16>, vector<128x128xf32> -> vector<128x128xf32>
      %15 = arith.addf %11, %14 : vector<128x128xf32>
      %c0_9 = arith.constant 0 : index
      %c0_10 = arith.constant 0 : index
      %16 = vector.load %arg9[%c0_9, %c0_10] : memref<128x128xf32, #tpu.memory_space<vmem>>, vector<128x128xf32>
      tpu.vector_store %arg9[%c0_9, %c0_10], %15 {strides = array<i32>} : memref<128x128xf32, #tpu.memory_space<vmem>>, vector<128x128xf32>,
    } else {
    }
    %c0_i32_2 = arith.constant 0 : i32
    %8 = arith.cmpi eq, %arg1, %c0_i32_2 : i32
    %9 = arith.extui %8 : i1 to i32
    %c0_i32_3 = arith.constant 0 : i32
    %10 = arith.cmpi ne, %9, %c0_i32_3 : i32
    scf.if %10 {
      %c0 = arith.constant 0 : index
      %c0_4 = arith.constant 0 : index
      %11 = vector.load %arg9[%c0, %c0_4] : memref<128x128xf32, #tpu.memory_space<vmem>>, vector<128x128xf32>
      %c0_5 = arith.constant 0 : index
      %c0_6 = arith.constant 0 : index
      %12 = vector.load %arg6[%c0_5, %c0_6] : memref<1x128xf32, #tpu.memory_space<vmem>>, vector<1x128xf32>
      %13 = vector.broadcast %12 : vector<1x128xf32> to vector<128x128xf32>
      %14 = arith.addf %11, %13 : vector<128x128xf32>
      %cst = arith.constant 0.000000e+00 : f32
      %15 = vector.broadcast %cst : f32 to vector<128x128xf32>
      %16 = arith.maximumf %14, %15 : vector<128x128xf32>
      %17 = arith.truncf %16 : vector<128x128xf32> to vector<128x128xbf16>
      %c0_7 = arith.constant 0 : index
      %c0_8 = arith.constant 0 : index
      %18 = vector.load %arg7[%c0_7, %c0_8] : memref<128x128xbf16, #tpu.memory_space<vmem>>, vector<128x128xbf16>
      %cst_9 = arith.constant dense<0.000000e+00> : vector<128x128xf32>
      %19 = tpu.matmul %17, %18, %cst_9 {dimension_numbers = #tpu.dot_dimension_numbers<[1], [0], [0], [1], [0, 0, 1, 1], [], []>} : vector<128x128xbf16>, vector<128x128xbf16>, vector<128x128xf32> -> vector<128x128xf32>
      %20 = arith.truncf %19 : vector<128x128xf32> to vector<128x128xbf16>
      %c0_10 = arith.constant 0 : index
      %c0_11 = arith.constant 0 : index
      %21 = vector.load %arg8[%c0_10, %c0_11] : memref<128x128xbf16, #tpu.memory_space<vmem>>, vector<128x128xbf16>
      tpu.vector_store %arg8[%c0_10, %c0_11], %20 {strides = array<i32>} : memref<128x128xbf16, #tpu.memory_space<vmem>>, vector<128x128xbf16>,
    } else {
    }
    return
  }
  func.func @transform_0(%arg0: i32, %arg1: i32, %arg2: memref<1x1xi32, #tpu.memory_space<smem>>, %arg3: memref<1xi32, #tpu.memory_space<smem>>) -> (i32, i32) {
    %0 = arith.index_cast %arg0 : i32 to index
    %1 = arith.index_cast %arg1 : i32 to index
    %2 = memref.load %arg2[%0, %1] : memref<1x1xi32, #tpu.memory_space<smem>>
    %c0_i32 = arith.constant 0 : i32
    return %arg0, %2 : i32, i32
  }
  func.func @transform_1(%arg0: i32, %arg1: i32, %arg2: memref<1x1xi32, #tpu.memory_space<smem>>, %arg3: memref<1xi32, #tpu.memory_space<smem>>) -> (i32, i32) {
    %0 = arith.index_cast %arg0 : i32 to index
    %1 = arith.index_cast %arg1 : i32 to index
    %2 = memref.load %arg2[%0, %1] : memref<1x1xi32, #tpu.memory_space<smem>>
    %c0_i32 = arith.constant 0 : i32
    %c0_i32_0 = arith.constant 0 : i32
    return %2, %c0_i32 : i32, i32
  }
  func.func @transform_2(%arg0: i32, %arg1: i32, %arg2: memref<1x1xi32, #tpu.memory_space<smem>>, %arg3: memref<1xi32, #tpu.memory_space<smem>>) -> (i32, i32) {
    %c0_i32 = arith.constant 0 : i32
    %c0_i32_0 = arith.constant 0 : i32
    %c0_i32_1 = arith.constant 0 : i32
    return %c0_i32, %c0_i32_0 : i32, i32
  }
  func.func @transform_3(%arg0: i32, %arg1: i32, %arg2: memref<1x1xi32, #tpu.memory_space<smem>>, %arg3: memref<1xi32, #tpu.memory_space<smem>>) -> (i32, i32) {
    %c0_i32 = arith.constant 0 : i32
    %c0_i32_0 = arith.constant 0 : i32
    %c0_i32_1 = arith.constant 0 : i32
    return %c0_i32, %c0_i32_0 : i32, i32
  }
  func.func @transform_4(%arg0: i32, %arg1: i32, %arg2: memref<1x1xi32, #tpu.memory_space<smem>>, %arg3: memref<1xi32, #tpu.memory_space<smem>>) -> (i32, i32) {
    %c0_i32 = arith.constant 0 : i32
    %c0_i32_0 = arith.constant 0 : i32
    return %arg0, %c0_i32 : i32, i32
  }
}

</mosaic_0001>

<llo_original>
// kernel: gcn_forward.3
$region0: #{gcn_forward.3}
  #allocation0 [shape = 'u32[]', space=smem, size = 0x4, offset = 0x4, fixed_abs, tag = 'smem constant byte address 0x4 - core index']
  #allocation1 [shape = 'u32[144,128]{1,0:T(1,128)}', space=vmem, size = 0x12000, scoped, tag = 'internal scratch']
  %s0 = inlined_call_operand.vmem [shape: bf16[128,128], index: 0, kind: input, shape index: {}]
  %s1 = inlined_call_operand.vmem [shape: bf16[128,128], index: 1, kind: input, shape index: {}]
  %s2 = inlined_call_operand.vmem [shape: bf16[128,128], index: 2, kind: output, shape index: {}]
  %s3 = sld [smem:[#allocation0]]
  $region18: #{gcn_forward.3} parent=0
    _
  %s5 = ssub.s32 1, %s3
  %s6 = scalar_select 0, %s5, %s3
  // Predicated region
  $region2: #{gcn_forward.3} parent=0 // pred_check
    _
  $region3: #{gcn_forward.3} parent=0 // pred_check_branch
    %8 = sbr.rel (0) target = $region5
  $region4: #{gcn_forward.3} parent=0 // pred_region
    _
  $region5: #{gcn_forward.3} parent=0 // pred_fallthru
    _
  // Predicated region
  $region6: #{gcn_forward.3} parent=0 // pred_check
    _
  $region7: #{gcn_forward.3} parent=0 // pred_check_branch
    %10 = sbr.rel (0) target = $region9
  $region8: #{gcn_forward.3} parent=0 // pred_region
    _
  $region9: #{gcn_forward.3} parent=0 // pred_fallthru
    _
  %v12 = vld [vmem:[%s0] sm:$0xf]
  %v13 = vld [vmem:[%s0 + $0x4] sm:$0xf]
  %v14 = vld [vmem:[%s0 + $0x8] sm:$0xf]
  %v15 = vld [vmem:[%s0 + $0xc] sm:$0xf]
  %v16 = vld [vmem:[%s0 + $0x10] sm:$0xf]
  %v17 = vld [vmem:[%s0 + $0x14] sm:$0xf]
  %v18 = vld [vmem:[%s0 + $0x18] sm:$0xf]
  %v19 = vld [vmem:[%s0 + $0x1c] sm:$0xf]
  %v20 = vld [vmem:[%s0 + $0x20] sm:$0xf]
  %v21 = vld [vmem:[%s0 + $0x24] sm:$0xf]
  %v22 = vld [vmem:[%s0 + $0x28] sm:$0xf]
  %v23 = vld [vmem:[%s0 + $0x2c] sm:$0xf]
  %v24 = vld [vmem:[%s0 + $0x30] sm:$0xf]
  %v25 = vld [vmem:[%s0 + $0x34] sm:$0xf]
  %v26 = vld [vmem:[%s0 + $0x38] sm:$0xf]
  %v27 = vld [vmem:[%s0 + $0x3c] sm:$0xf]
  %v28 = vld [vmem:[%s1] sm:$0xf]
  %v29 = vld [vmem:[%s1 + $0x4] sm:$0xf]
  %v30 = vld [vmem:[%s1 + $0x8] sm:$0xf]
  %v31 = vld [vmem:[%s1 + $0xc] sm:$0xf]
  %v32 = vld [vmem:[%s1 + $0x10] sm:$0xf]
  %v33 = vld [vmem:[%s1 + $0x14] sm:$0xf]
  %v34 = vld [vmem:[%s1 + $0x18] sm:$0xf]
  %v35 = vld [vmem:[%s1 + $0x1c] sm:$0xf]
  %v36 = vld [vmem:[%s1 + $0x20] sm:$0xf]
  %v37 = vld [vmem:[%s1 + $0x24] sm:$0xf]
  %v38 = vld [vmem:[%s1 + $0x28] sm:$0xf]
  %v39 = vld [vmem:[%s1 + $0x2c] sm:$0xf]
  %v40 = vld [vmem:[%s1 + $0x30] sm:$0xf]
  %v41 = vld [vmem:[%s1 + $0x34] sm:$0xf]
  %v42 = vld [vmem:[%s1 + $0x38] sm:$0xf]
  %v43 = vld [vmem:[%s1 + $0x3c] sm:$0xf]
  %v60 = vunpack.c.l.b16 %v12
  %v61 = vunpack.c.l.b16 %v13
  %v62 = vunpack.c.l.b16 %v14
  %v63 = vunpack.c.l.b16 %v15
  %v64 = vunpack.c.l.b16 %v16
  %v65 = vunpack.c.l.b16 %v17
  %v66 = vunpack.c.l.b16 %v18
  %v67 = vunpack.c.l.b16 %v19
  %v68 = vunpack.c.l.b16 %v20
  %v69 = vunpack.c.l.b16 %v21
  %v70 = vunpack.c.l.b16 %v22
  %v71 = vunpack.c.l.b16 %v23
  %v72 = vunpack.c.l.b16 %v24
  %v73 = vunpack.c.l.b16 %v25
  %v74 = vunpack.c.l.b16 %v26
  %v75 = vunpack.c.l.b16 %v27
  %v76 = vpack.c.b16 %v61, %v60
  %v77 = vpack.c.b16 %v63, %v62
  %v78 = vpack.c.b16 %v65, %v64
  %v79 = vpack.c.b16 %v67, %v66
  %v80 = vpack.c.b16 %v69, %v68
  %v81 = vpack.c.b16 %v71, %v70
  %v82 = vpack.c.b16 %v73, %v72
  %v83 = vpack.c.b16 %v75, %v74
  %v108 = vunpack.c.l.b16 %v28
  %v109 = vunpack.c.l.b16 %v29
  %v110 = vunpack.c.l.b16 %v30
  %v111 = vunpack.c.l.b16 %v31
  %v112 = vunpack.c.l.b16 %v32
  %v113 = vunpack.c.l.b16 %v33
  %v114 = vunpack.c.l.b16 %v34
  %v115 = vunpack.c.l.b16 %v35
  %v116 = vunpack.c.l.b16 %v36
  %v117 = vunpack.c.l.b16 %v37
  %v118 = vunpack.c.l.b16 %v38
  %v119 = vunpack.c.l.b16 %v39
  %v120 = vunpack.c.l.b16 %v40
  %v121 = vunpack.c.l.b16 %v41
  %v122 = vunpack.c.l.b16 %v42
  %v123 = vunpack.c.l.b16 %v43
  %v124 = vpack.c.b16 %v109, %v108
  %v125 = vpack.c.b16 %v111, %v110
  %v126 = vpack.c.b16 %v113, %v112
  %v127 = vpack.c.b16 %v115, %v114
  %v128 = vpack.c.b16 %v117, %v116
  %v129 = vpack.c.b16 %v119, %v118
  %v130 = vpack.c.b16 %v121, %v120
  %v131 = vpack.c.b16 %v123, %v122
  %140 = vmatprep.subr.bf16.mxu0 0
  %141 = vmatpush1.bf16.msra.mxu0 %v124
  %142 = vmatprep.subr.bf16.mxu0 0
  %143 = vmatpush1.bf16.msra.mxu0 %v125
  %144 = vmatprep.subr.bf16.mxu0 0
  %145 = vmatpush1.bf16.msra.mxu0 %v126
  %146 = vmatprep.subr.bf16.mxu0 0
  %147 = vmatpush1.bf16.msra.mxu0 %v127
  %148 = vmatprep.subr.bf16.mxu0 0
  %149 = vmatpush1.bf16.msra.mxu0 %v128
  %150 = vmatprep.subr.bf16.mxu0 0
  %151 = vmatpush1.bf16.msra.mxu0 %v129
  %152 = vmatprep.subr.bf16.mxu0 0
  %153 = vmatpush1.bf16.msra.mxu0 %v130
  %154 = vmatprep.subr.bf16.mxu0 0
  %155 = vmatpush1.bf16.msra.mxu0 %v131
  %156 = vmatprep.subr.bf16.mxu0 0
  %157 = vmatpush1.bf16.msra.mxu0 0
  %158 = vmatprep.subr.bf16.mxu0 0
  %159 = vmatpush1.bf16.msra.mxu0 0
  %160 = vmatprep.subr.bf16.mxu0 0
  %161 = vmatpush1.bf16.msra.mxu0 0
  %162 = vmatprep.subr.bf16.mxu0 0
  %163 = vmatpush1.bf16.msra.mxu0 0
  %164 = vmatprep.subr.bf16.mxu0 0
  %165 = vmatpush1.bf16.msra.mxu0 0
  %166 = vmatprep.subr.bf16.mxu0 0
  %167 = vmatpush1.bf16.msra.mxu0 0
  %168 = vmatprep.subr.bf16.mxu0 0
  %169 = vmatpush1.bf16.msra.mxu0 0
  %170 = vmatprep.subr.bf16.mxu0 0
  %171 = vmatpush1.bf16.msra.mxu0 0
  %172 = vmatprep.mubr.bf16.mxu0 0
  %173 = vmatmul.mubr.bf16.gmra.mrb[0].mxu0 %v76
  %v174 = vpop.f32.mrb[0].mxu0
  %v175 = vadd.f32 0.0, %v174
  %v176 = vpop.f32.mrb[0].mxu0
  %v177 = vpop.f32.mrb[0].mxu0
  %v178 = vadd.f32 0.0, %v177
  %v179 = vpop.f32.mrb[0].mxu0
  %180 = vmatprep.mubr.bf16.mxu0 0
  %181 = vmatmul.mubr.bf16.gmra.mrb[0].mxu0 %v77
  %v182 = vpop.f32.mrb[0].mxu0
  %v183 = vadd.f32 0.0, %v182
  %v184 = vpop.f32.mrb[0].mxu0
  %v185 = vpop.f32.mrb[0].mxu0
  %v186 = vadd.f32 0.0, %v185
  %v187 = vpop.f32.mrb[0].mxu0
  %188 = vmatprep.mubr.bf16.mxu0 0
  %189 = vmatmul.mubr.bf16.gmra.mrb[0].mxu0 %v78
  %v190 = vpop.f32.mrb[0].mxu0
  %v191 = vadd.f32 0.0, %v190
  %v192 = vpop.f32.mrb[0].mxu0
  %v193 = vpop.f32.mrb[0].mxu0
  %v194 = vadd.f32 0.0, %v193
  %v195 = vpop.f32.mrb[0].mxu0
  %196 = vmatprep.mubr.bf16.mxu0 0
  %197 = vmatmul.mubr.bf16.gmra.mrb[0].mxu0 %v79
  %v198 = vpop.f32.mrb[0].mxu0
  %v199 = vadd.f32 0.0, %v198
  %v200 = vpop.f32.mrb[0].mxu0
  %v201 = vpop.f32.mrb[0].mxu0
  %v202 = vadd.f32 0.0, %v201
  %v203 = vpop.f32.mrb[0].mxu0
  %204 = vmatprep.mubr.bf16.mxu0 0
  %205 = vmatmul.mubr.bf16.gmra.mrb[0].mxu0 %v80
  %v206 = vpop.f32.mrb[0].mxu0
  %v207 = vadd.f32 0.0, %v206
  %v208 = vpop.f32.mrb[0].mxu0
  %v209 = vpop.f32.mrb[0].mxu0
  %v210 = vadd.f32 0.0, %v209
  %v211 = vpop.f32.mrb[0].mxu0
  %212 = vmatprep.mubr.bf16.mxu0 0
  %213 = vmatmul.mubr.bf16.gmra.mrb[0].mxu0 %v81
  %v214 = vpop.f32.mrb[0].mxu0
  %v215 = vadd.f32 0.0, %v214
  %v216 = vpop.f32.mrb[0].mxu0
  %v217 = vpop.f32.mrb[0].mxu0
  %v218 = vadd.f32 0.0, %v217
  %v219 = vpop.f32.mrb[0].mxu0
  %220 = vmatprep.mubr.bf16.mxu0 0
  %221 = vmatmul.mubr.bf16.gmra.mrb[0].mxu0 %v82
  %v222 = vpop.f32.mrb[0].mxu0
  %v223 = vadd.f32 0.0, %v222
  %v224 = vpop.f32.mrb[0].mxu0
  %v225 = vpop.f32.mrb[0].mxu0
  %v226 = vadd.f32 0.0, %v225
  %v227 = vpop.f32.mrb[0].mxu0
  %228 = vmatprep.mubr.bf16.mxu0 0
  %229 = vmatmul.mubr.bf16.gmra.mrb[0].mxu0 %v83
  %v230 = vpop.f32.mrb[0].mxu0
  %v231 = vadd.f32 0.0, %v230
  %v232 = vpop.f32.mrb[0].mxu0
  %v233 = vpop.f32.mrb[0].mxu0
  %v234 = vadd.f32 0.0, %v233
  %v235 = vpop.f32.mrb[0].mxu0
  %236 = vdwg.mxu0
  %v237 = vpack.c.bf16 %v178, %v175
  %v238 = vpack.c.bf16 %v186, %v183
  %v239 = vpack.c.bf16 %v194, %v191
  %v240 = vpack.c.bf16 %v202, %v199
  %v241 = vpack.c.bf16 %v210, %v207
  %v242 = vpack.c.bf16 %v218, %v215
  %v243 = vpack.c.bf16 %v226, %v223
  %v244 = vpack.c.bf16 %v234, %v231
  %v253 = vunpack.c.l.b16 %v237
  %v254 = vunpack.c.h.b16 %v237
  %v255 = vunpack.c.l.b16 %v238
  %v256 = vunpack.c.h.b16 %v238
  %v257 = vunpack.c.l.b16 %v239
  %v258 = vunpack.c.h.b16 %v239
  %v259 = vunpack.c.l.b16 %v240
  %v260 = vunpack.c.h.b16 %v240
  %v261 = vunpack.c.l.b16 %v241
  %v262 = vunpack.c.h.b16 %v241
  %v263 = vunpack.c.l.b16 %v242
  %v264 = vunpack.c.h.b16 %v242
  %v265 = vunpack.c.l.b16 %v243
  %v266 = vunpack.c.h.b16 %v243
  %v267 = vunpack.c.l.b16 %v244
  %v268 = vunpack.c.h.b16 %v244
  %v269 = vpack.c.b16 %v253, %v253
  %v270 = vpack.c.b16 %v254, %v254
  %v271 = vpack.c.b16 %v255, %v255
  %v272 = vpack.c.b16 %v256, %v256
  %v273 = vpack.c.b16 %v257, %v257
  %v274 = vpack.c.b16 %v258, %v258
  %v275 = vpack.c.b16 %v259, %v259
  %v276 = vpack.c.b16 %v260, %v260
  %v277 = vpack.c.b16 %v261, %v261
  %v278 = vpack.c.b16 %v262, %v262
  %v279 = vpack.c.b16 %v263, %v263
  %v280 = vpack.c.b16 %v264, %v264
  %v281 = vpack.c.b16 %v265, %v265
  %v282 = vpack.c.b16 %v266, %v266
  %v283 = vpack.c.b16 %v267, %v267
  %v284 = vpack.c.b16 %v268, %v268
  %301 = vst [vmem:[%s2] sm:$0xf] %v269
  %302 = vst [vmem:[%s2 + $0x4] sm:$0xf] %v270
  %303 = vst [vmem:[%s2 + $0x8] sm:$0xf] %v271
  %304 = vst [vmem:[%s2 + $0xc] sm:$0xf] %v272
  %305 = vst [vmem:[%s2 + $0x10] sm:$0xf] %v273
  %306 = vst [vmem:[%s2 + $0x14] sm:$0xf] %v274
  %307 = vst [vmem:[%s2 + $0x18] sm:$0xf] %v275
  %308 = vst [vmem:[%s2 + $0x1c] sm:$0xf] %v276
  %309 = vst [vmem:[%s2 + $0x20] sm:$0xf] %v277
  %310 = vst [vmem:[%s2 + $0x24] sm:$0xf] %v278
  %311 = vst [vmem:[%s2 + $0x28] sm:$0xf] %v279
  %312 = vst [vmem:[%s2 + $0x2c] sm:$0xf] %v280
  %313 = vst [vmem:[%s2 + $0x30] sm:$0xf] %v281
  %314 = vst [vmem:[%s2 + $0x34] sm:$0xf] %v282
  %315 = vst [vmem:[%s2 + $0x38] sm:$0xf] %v283
  %316 = vst [vmem:[%s2 + $0x3c] sm:$0xf] %v284
  // Predicated region
  $region10: #{gcn_forward.3} parent=0 // pred_check
    _
  $region11: #{gcn_forward.3} parent=0 // pred_check_branch
    %318 = sbr.rel (0) target = $region13
  $region12: #{gcn_forward.3} parent=0 // pred_region
    _
  $region13: #{gcn_forward.3} parent=0 // pred_fallthru
    _
  // Predicated region
  $region14: #{gcn_forward.3} parent=0 // pred_check
    _
  $region15: #{gcn_forward.3} parent=0 // pred_check_branch
    %320 = sbr.rel (0) target = $region17
  $region16: #{gcn_forward.3} parent=0 // pred_region
    _
  $region17: #{gcn_forward.3} parent=0 // pred_fallthru
    _

// kernel: gcn_forward.5
$region0: #{gcn_forward.5}
  #allocation0 [shape = 'u32[]', space=smem, size = 0x4, offset = 0x4, fixed_abs, tag = 'smem constant byte address 0x4 - core index']
  #allocation1 [shape = 'u32[144,128]{1,0:T(1,128)}', space=vmem, size = 0x12000, scoped, tag = 'internal scratch']
  #allocation2 [shape = 'f32[128,128]{1,0:T(8,128)}', space=vmem, size = 0x10000, scoped, tag = 'scratch operand']
  #allocation3 [shape = 'f32[16,128]{1,0:T(8,128)}', space=vmem, size = 0x2000, scoped, tag = 'scratch operand']
  #allocation4 [shape = 's32[1]{0}', space=sflag, size = 0x4, scoped, tag = 'scoped memory for gcn_forward.5']
  #allocation5 [shape = 's32[1,1]{1,0:T(1,128)S(6)}', space=smem, size = 0x200, scoped, tag = 'prefetched SMEM operand 0']
  #allocation6 [shape = 's32[1]{0:T(128)S(6)}', space=smem, size = 0x200, scoped, tag = 'prefetched SMEM operand 1']
  %s0 = inlined_call_operand.<no memory space> [shape: s32[1,1], index: 0, kind: input, shape index: {}]
  %s1 = inlined_call_operand.<no memory space> [shape: s32[1], index: 1, kind: input, shape index: {}]
  %s2 = inlined_call_operand.vmem [shape: bf16[128,128], index: 2, kind: input, shape index: {}]
  %s3 = inlined_call_operand.vmem [shape: bf16[128,128], index: 3, kind: input, shape index: {}]
  %s4 = inlined_call_operand.vmem [shape: f32[1,128], index: 4, kind: input, shape index: {}]
  %s5 = inlined_call_operand.vmem [shape: bf16[16,128], index: 5, kind: input, shape index: {}]
  %s6 = inlined_call_operand.vmem [shape: bf16[128,128], index: 6, kind: input, shape index: {}]
  %s7 = inlined_call_operand.vmem [shape: f32[1,128], index: 7, kind: input, shape index: {}]
  %s8 = inlined_call_operand.vmem [shape: f32[16,128], index: 8, kind: output, shape index: {}]
  %s9 = sld [smem:[#allocation0]]
  $region54: #{gcn_forward.5} parent=0
    _
  %s11 = ssub.s32 1, %s9
  %s12 = scalar_select 0, %s11, %s9
  %13 = sst [smem:[#allocation5]] %s0
  %14 = sst [smem:[#allocation6]] %s1
  // Predicated region
  $region2: #{gcn_forward.5} parent=0 // pred_check
    _
  $region3: #{gcn_forward.5} parent=0 // pred_check_branch
    %16 = sbr.rel (0) target = $region5
  $region4: #{gcn_forward.5} parent=0 // pred_region
    %s17 = sadd.s32 0, 0
    %s18 = smul.u32 %s17, 128
    %s19 = sadd.s32 %s18, 0
    %s20 = sld [smem:[#allocation5 + %s19]]
    %p21 = scmp.lt.s32.totalorder %s20, 0
    %s22 = scalar_select %p21, %s20, 0
    %s23 = smul.addr %s22, 4
    %s24 = scalar_lea.vmem %s2, %s23
    %s25 = sadd.s32 0, 0
    %s26 = smul.u32 %s25, 128
    %s27 = sadd.s32 %s26, 0
    %s28 = sld [smem:[#allocation5 + %s27]]
  $region5: #{gcn_forward.5} parent=0 // pred_fallthru
    _
  // Predicated region
  $region6: #{gcn_forward.5} parent=0 // pred_check
    _
  $region7: #{gcn_forward.5} parent=0 // pred_check_branch
    %30 = sbr.rel (0) target = $region9
  $region8: #{gcn_forward.5} parent=0 // pred_region
    %s31 = sadd.s32 0, 0
    %s32 = smul.u32 %s31, 128
    %s33 = sadd.s32 %s32, 0
    %s34 = sld [smem:[#allocation5 + %s33]]
    %s35 = smul.u32 16, %s34
    %p36 = scmp.lt.s32.totalorder %s35, 15
    %s37 = scalar_select %p36, %s35, 15
    %s38 = smul.addr %s37, 4
    %s39 = scalar_lea.vmem %s3, %s38
    %s40 = sadd.s32 0, 0
    %s41 = smul.u32 %s40, 128
    %s42 = sadd.s32 %s41, 0
    %s43 = sld [smem:[#allocation5 + %s42]]
    %s44 = smul.u32 16, %s43
  $region9: #{gcn_forward.5} parent=0 // pred_fallthru
    _
  // Predicated region
  $region10: #{gcn_forward.5} parent=0 // pred_check
    _
  $region11: #{gcn_forward.5} parent=0 // pred_check_branch
    %46 = sbr.rel (0) target = $region13
  $region12: #{gcn_forward.5} parent=0 // pred_region
    _
  $region13: #{gcn_forward.5} parent=0 // pred_fallthru
    _
  // Predicated region
  $region14: #{gcn_forward.5} parent=0 // pred_check
    _
  $region15: #{gcn_forward.5} parent=0 // pred_check_branch
    %48 = sbr.rel (0) target = $region17
  $region16: #{gcn_forward.5} parent=0 // pred_region
    _
  $region17: #{gcn_forward.5} parent=0 // pred_fallthru
    _
  // Predicated region
  $region18: #{gcn_forward.5} parent=0 // pred_check
    _
  $region19: #{gcn_forward.5} parent=0 // pred_check_branch
    %50 = sbr.rel (0) target = $region21
  $region20: #{gcn_forward.5} parent=0 // pred_region
    _
  $region21: #{gcn_forward.5} parent=0 // pred_fallthru
    _
  // Predicated region
  $region22: #{gcn_forward.5} parent=0 // pred_check
    _
  $region23: #{gcn_forward.5} parent=0 // pred_check_branch
    %52 = sbr.rel (0) target = $region25
  $region24: #{gcn_forward.5} parent=0 // pred_region
    _
  $region25: #{gcn_forward.5} parent=0 // pred_fallthru
    _
  %s53 = sadd.s32 0, 0
  %s54 = smul.u32 %s53, 128
  %s55 = sadd.s32 %s54, 0
  %s56 = sld [smem:[#allocation5 + %s55]]
  %p57 = scmp.lt.s32.totalorder %s56, 0
  %s58 = scalar_select %p57, %s56, 0
  %s59 = smul.addr %s58, 4
  %s60 = scalar_lea.vmem %s2, %s59
  %s61 = sadd.s32 0, 0
  %s62 = smul.u32 %s61, 128
  %s63 = sadd.s32 %s62, 0
  %s64 = sld [smem:[#allocation5 + %s63]]
  %s65 = smul.u32 16, %s64
  %p66 = scmp.lt.s32.totalorder %s65, 15
  %s67 = scalar_select %p66, %s65, 15
  %s68 = smul.addr %s67, 4
  %s69 = scalar_lea.vmem %s3, %s68
  %s70 = sadd.s32 0, 0
  %s71 = smul.u32 %s70, 128
  %s72 = sadd.s32 %s71, 0
  %s73 = sld [smem:[#allocation5 + %s72]]
  %p74 = scmp.lt.s32.totalorder %s73, 0
  %s75 = scalar_select %p74, %s73, 0
  %s76 = smul.addr %s75, 4
  %s77 = scalar_lea.vmem %s2, %s76
  %s78 = sadd.s32 0, 0
  %s79 = smul.u32 %s78, 128
  %s80 = sadd.s32 %s79, 0
  %s81 = sld [smem:[#allocation5 + %s80]]
  %s82 = sadd.s32 0, 0
  %s83 = smul.u32 %s82, 128
  %s84 = sadd.s32 %s83, 0
  %s85 = sld [smem:[#allocation5 + %s84]]
  %s86 = smul.u32 16, %s85
  %p87 = scmp.lt.s32.totalorder %s86, 15
  %s88 = scalar_select %p87, %s86, 15
  %s89 = smul.addr %s88, 4
  %s90 = scalar_lea.vmem %s3, %s89
  %s91 = sadd.s32 0, 0
  %s92 = smul.u32 %s91, 128
  %s93 = sadd.s32 %s92, 0
  %s94 = sld [smem:[#allocation5 + %s93]]
  %s95 = smul.u32 16, %s94
  %p97 = scmp.eq.s32.totalorder 0, 0
  %p98 = scmp.eq.s32.totalorder 0, 0
  %p99 = pnand %p97, %p98
  %p100 = pneg %p99
  // Predicated region
  $region26: #{gcn_forward.5} parent=0 // pred_check
    _
  $region27: #{gcn_forward.5} parent=0 // pred_check_branch
    %102 = sbr.rel (%p99) target = $region29
  $region28: #{gcn_forward.5} parent=0 // pred_region
    %103 = vst [vmem:[#allocation3] sm:$0xff] 0.0
    %104 = vst [vmem:[#allocation3 + $0x8] sm:$0xff] 0.0
  $region29: #{gcn_forward.5} parent=0 // pred_fallthru
    _
  // Predicated region
  $region30: #{gcn_forward.5} parent=0 // pred_check
    %p105 = pneg %p98
  $region31: #{gcn_forward.5} parent=0 // pred_check_branch
    %107 = sbr.rel (%p105) target = $region33
  $region32: #{gcn_forward.5} parent=0 // pred_region
    %108 = vst [vmem:[#allocation2] sm:$0xff] 0.0
    %109 = vst [vmem:[#allocation2 + $0x8] sm:$0xff] 0.0
    %110 = vst [vmem:[#allocation2 + $0x10] sm:$0xff] 0.0
    %111 = vst [vmem:[#allocation2 + $0x18] sm:$0xff] 0.0
    %112 = vst [vmem:[#allocation2 + $0x20] sm:$0xff] 0.0
    %113 = vst [vmem:[#allocation2 + $0x28] sm:$0xff] 0.0
    %114 = vst [vmem:[#allocation2 + $0x30] sm:$0xff] 0.0
    %115 = vst [vmem:[#allocation2 + $0x38] sm:$0xff] 0.0
    %116 = vst [vmem:[#allocation2 + $0x40] sm:$0xff] 0.0
    %117 = vst [vmem:[#allocation2 + $0x48] sm:$0xff] 0.0
    %118 = vst [vmem:[#allocation2 + $0x50] sm:$0xff] 0.0
    %119 = vst [vmem:[#allocation2 + $0x58] sm:$0xff] 0.0
    %120 = vst [vmem:[#allocation2 + $0x60] sm:$0xff] 0.0
    %121 = vst [vmem:[#allocation2 + $0x68] sm:$0xff] 0.0
    %122 = vst [vmem:[#allocation2 + $0x70] sm:$0xff] 0.0
    %123 = vst [vmem:[#allocation2 + $0x78] sm:$0xff] 0.0
  $region33: #{gcn_forward.5} parent=0 // pred_fallthru
    _
  %s124 = sld [smem:[#allocation6]]
  %p125 = scmp.lt.s32.totalorder 0, %s124
  // Predicated region
  $region34: #{gcn_forward.5} parent=0 // pred_check
    %p126 = pneg %p125
  $region35: #{gcn_forward.5} parent=0 // pred_check_branch
    %128 = sbr.rel (%p126) target = $region37
  $region36: #{gcn_forward.5} parent=0 // pred_region
    %v129 = vld [vmem:[#allocation2] sm:$0xff]
    %v130 = vld [vmem:[#allocation2 + $0x8] sm:$0xff]
    %v131 = vld [vmem:[#allocation2 + $0x10] sm:$0xff]
    %v132 = vld [vmem:[#allocation2 + $0x18] sm:$0xff]
    %v133 = vld [vmem:[#allocation2 + $0x20] sm:$0xff]
    %v134 = vld [vmem:[#allocation2 + $0x28] sm:$0xff]
    %v135 = vld [vmem:[#allocation2 + $0x30] sm:$0xff]
    %v136 = vld [vmem:[#allocation2 + $0x38] sm:$0xff]
    %v137 = vld [vmem:[#allocation2 + $0x40] sm:$0xff]
    %v138 = vld [vmem:[#allocation2 + $0x48] sm:$0xff]
    %v139 = vld [vmem:[#allocation2 + $0x50] sm:$0xff]
    %v140 = vld [vmem:[#allocation2 + $0x58] sm:$0xff]
    %v141 = vld [vmem:[#allocation2 + $0x60] sm:$0xff]
    %v142 = vld [vmem:[#allocation2 + $0x68] sm:$0xff]
    %v143 = vld [vmem:[#allocation2 + $0x70] sm:$0xff]
    %v144 = vld [vmem:[#allocation2 + $0x78] sm:$0xff]
    %v145 = vld [vmem:[%s77] sm:$0xf]
    %v146 = vld [vmem:[%s77 + $0x4] sm:$0xf]
    %v147 = vld [vmem:[%s77 + $0x8] sm:$0xf]
    %v148 = vld [vmem:[%s77 + $0xc] sm:$0xf]
    %v149 = vld [vmem:[%s77 + $0x10] sm:$0xf]
    %v150 = vld [vmem:[%s77 + $0x14] sm:$0xf]
    %v151 = vld [vmem:[%s77 + $0x18] sm:$0xf]
    %v152 = vld [vmem:[%s77 + $0x1c] sm:$0xf]
    %v153 = vld [vmem:[%s77 + $0x20] sm:$0xf]
    %v154 = vld [vmem:[%s77 + $0x24] sm:$0xf]
    %v155 = vld [vmem:[%s77 + $0x28] sm:$0xf]
    %v156 = vld [vmem:[%s77 + $0x2c] sm:$0xf]
    %v157 = vld [vmem:[%s77 + $0x30] sm:$0xf]
    %v158 = vld [vmem:[%s77 + $0x34] sm:$0xf]
    %v159 = vld [vmem:[%s77 + $0x38] sm:$0xf]
    %v160 = vld [vmem:[%s77 + $0x3c] sm:$0xf]
    %v161 = vld [vmem:[%s90] sm:$0xf]
    %v162 = vld [vmem:[%s90 + $0x4] sm:$0xf]
    %v163 = vld [vmem:[%s90 + $0x8] sm:$0xf]
    %v164 = vld [vmem:[%s90 + $0xc] sm:$0xf]
    %v165 = vld [vmem:[%s90 + $0x10] sm:$0xf]
    %v166 = vld [vmem:[%s90 + $0x14] sm:$0xf]
    %v167 = vld [vmem:[%s90 + $0x18] sm:$0xf]
    %v168 = vld [vmem:[%s90 + $0x1c] sm:$0xf]
    %v169 = vld [vmem:[%s90 + $0x20] sm:$0xf]
    %v170 = vld [vmem:[%s90 + $0x24] sm:$0xf]
    %v171 = vld [vmem:[%s90 + $0x28] sm:$0xf]
    %v172 = vld [vmem:[%s90 + $0x2c] sm:$0xf]
    %v173 = vld [vmem:[%s90 + $0x30] sm:$0xf]
    %v174 = vld [vmem:[%s90 + $0x34] sm:$0xf]
    %v175 = vld [vmem:[%s90 + $0x38] sm:$0xf]
    %v176 = vld [vmem:[%s90 + $0x3c] sm:$0xf]
    %v193 = vunpack.c.l.b16 %v145
    %v194 = vunpack.c.l.b16 %v146
    %v195 = vunpack.c.l.b16 %v147
    %v196 = vunpack.c.l.b16 %v148
    %v197 = vunpack.c.l.b16 %v149
    %v198 = vunpack.c.l.b16 %v150
    %v199 = vunpack.c.l.b16 %v151
    %v200 = vunpack.c.l.b16 %v152
    %v201 = vunpack.c.l.b16 %v153
    %v202 = vunpack.c.l.b16 %v154
    %v203 = vunpack.c.l.b16 %v155
    %v204 = vunpack.c.l.b16 %v156
    %v205 = vunpack.c.l.b16 %v157
    %v206 = vunpack.c.l.b16 %v158
    %v207 = vunpack.c.l.b16 %v159
    %v208 = vunpack.c.l.b16 %v160
    %v209 = vpack.c.b16 %v194, %v193
    %v210 = vpack.c.b16 %v196, %v195
    %v211 = vpack.c.b16 %v198, %v197
    %v212 = vpack.c.b16 %v200, %v199
    %v213 = vpack.c.b16 %v202, %v201
    %v214 = vpack.c.b16 %v204, %v203
    %v215 = vpack.c.b16 %v206, %v205
    %v216 = vpack.c.b16 %v208, %v207
    %v241 = vunpack.c.l.b16 %v161
    %v242 = vunpack.c.l.b16 %v162
    %v243 = vunpack.c.l.b16 %v163
    %v244 = vunpack.c.l.b16 %v164
    %v245 = vunpack.c.l.b16 %v165
    %v246 = vunpack.c.l.b16 %v166
    %v247 = vunpack.c.l.b16 %v167
    %v248 = vunpack.c.l.b16 %v168
    %v249 = vunpack.c.l.b16 %v169
    %v250 = vunpack.c.l.b16 %v170
    %v251 = vunpack.c.l.b16 %v171
    %v252 = vunpack.c.l.b16 %v172
    %v253 = vunpack.c.l.b16 %v173
    %v254 = vunpack.c.l.b16 %v174
    %v255 = vunpack.c.l.b16 %v175
    %v256 = vunpack.c.l.b16 %v176
    %v257 = vpack.c.b16 %v242, %v241
    %v258 = vpack.c.b16 %v244, %v243
    %v259 = vpack.c.b16 %v246, %v245
    %v260 = vpack.c.b16 %v248, %v247
    %v261 = vpack.c.b16 %v250, %v249
    %v262 = vpack.c.b16 %v252, %v251
    %v263 = vpack.c.b16 %v254, %v253
    %v264 = vpack.c.b16 %v256, %v255
    %273 = vmatprep.subr.bf16.mxu0 0
    %274 = vmatpush1.bf16.msra.mxu0 %v257
    %275 = vmatprep.subr.bf16.mxu0 0
    %276 = vmatpush1.bf16.msra.mxu0 %v258
    %277 = vmatprep.subr.bf16.mxu0 0
    %278 = vmatpush1.bf16.msra.mxu0 %v259
    %279 = vmatprep.subr.bf16.mxu0 0
    %280 = vmatpush1.bf16.msra.mxu0 %v260
    %281 = vmatprep.subr.bf16.mxu0 0
    %282 = vmatpush1.bf16.msra.mxu0 %v261
    %283 = vmatprep.subr.bf16.mxu0 0
    %284 = vmatpush1.bf16.msra.mxu0 %v262
    %285 = vmatprep.subr.bf16.mxu0 0
    %286 = vmatpush1.bf16.msra.mxu0 %v263
    %287 = vmatprep.subr.bf16.mxu0 0
    %288 = vmatpush1.bf16.msra.mxu0 %v264
    %289 = vmatprep.subr.bf16.mxu0 0
    %290 = vmatpush1.bf16.msra.mxu0 0
    %291 = vmatprep.subr.bf16.mxu0 0
    %292 = vmatpush1.bf16.msra.mxu0 0
    %293 = vmatprep.subr.bf16.mxu0 0
    %294 = vmatpush1.bf16.msra.mxu0 0
    %295 = vmatprep.subr.bf16.mxu0 0
    %296 = vmatpush1.bf16.msra.mxu0 0
    %297 = vmatprep.subr.bf16.mxu0 0
    %298 = vmatpush1.bf16.msra.mxu0 0
    %299 = vmatprep.subr.bf16.mxu0 0
    %300 = vmatpush1.bf16.msra.mxu0 0
    %301 = vmatprep.subr.bf16.mxu0 0
    %302 = vmatpush1.bf16.msra.mxu0 0
    %303 = vmatprep.subr.bf16.mxu0 0
    %304 = vmatpush1.bf16.msra.mxu0 0
    %305 = vmatprep.mubr.bf16.mxu0 0
    %306 = vmatmul.mubr.bf16.gmra.mrb[0].mxu0 %v209
    %v307 = vpop.f32.mrb[0].mxu0
    %v308 = vadd.f32 0.0, %v307
    %v309 = vpop.f32.mrb[0].mxu0
    %v310 = vpop.f32.mrb[0].mxu0
    %v311 = vadd.f32 0.0, %v310
    %v312 = vpop.f32.mrb[0].mxu0
    %313 = vmatprep.mubr.bf16.mxu0 0
    %314 = vmatmul.mubr.bf16.gmra.mrb[0].mxu0 %v210
    %v315 = vpop.f32.mrb[0].mxu0
    %v316 = vadd.f32 0.0, %v315
    %v317 = vpop.f32.mrb[0].mxu0
    %v318 = vpop.f32.mrb[0].mxu0
    %v319 = vadd.f32 0.0, %v318
    %v320 = vpop.f32.mrb[0].mxu0
    %321 = vmatprep.mubr.bf16.mxu0 0
    %322 = vmatmul.mubr.bf16.gmra.mrb[0].mxu0 %v211
    %v323 = vpop.f32.mrb[0].mxu0
    %v324 = vadd.f32 0.0, %v323
    %v325 = vpop.f32.mrb[0].mxu0
    %v326 = vpop.f32.mrb[0].mxu0
    %v327 = vadd.f32 0.0, %v326
    %v328 = vpop.f32.mrb[0].mxu0
    %329 = vmatprep.mubr.bf16.mxu0 0
    %330 = vmatmul.mubr.bf16.gmra.mrb[0].mxu0 %v212
    %v331 = vpop.f32.mrb[0].mxu0
    %v332 = vadd.f32 0.0, %v331
    %v333 = vpop.f32.mrb[0].mxu0
    %v334 = vpop.f32.mrb[0].mxu0
    %v335 = vadd.f32 0.0, %v334
    %v336 = vpop.f32.mrb[0].mxu0
    %337 = vmatprep.mubr.bf16.mxu0 0
    %338 = vmatmul.mubr.bf16.gmra.mrb[0].mxu0 %v213
    %v339 = vpop.f32.mrb[0].mxu0
    %v340 = vadd.f32 0.0, %v339
    %v341 = vpop.f32.mrb[0].mxu0
    %v342 = vpop.f32.mrb[0].mxu0
    %v343 = vadd.f32 0.0, %v342
    %v344 = vpop.f32.mrb[0].mxu0
    %345 = vmatprep.mubr.bf16.mxu0 0
    %346 = vmatmul.mubr.bf16.gmra.mrb[0].mxu0 %v214
    %v347 = vpop.f32.mrb[0].mxu0
    %v348 = vadd.f32 0.0, %v347
    %v349 = vpop.f32.mrb[0].mxu0
    %v350 = vpop.f32.mrb[0].mxu0
    %v351 = vadd.f32 0.0, %v350
    %v352 = vpop.f32.mrb[0].mxu0
    %353 = vmatprep.mubr.bf16.mxu0 0
    %354 = vmatmul.mubr.bf16.gmra.mrb[0].mxu0 %v215
    %v355 = vpop.f32.mrb[0].mxu0
    %v356 = vadd.f32 0.0, %v355
    %v357 = vpop.f32.mrb[0].mxu0
    %v358 = vpop.f32.mrb[0].mxu0
    %v359 = vadd.f32 0.0, %v358
    %v360 = vpop.f32.mrb[0].mxu0
    %361 = vmatprep.mubr.bf16.mxu0 0
    %362 = vmatmul.mubr.bf16.gmra.mrb[0].mxu0 %v216
    %v363 = vpop.f32.mrb[0].mxu0
    %v364 = vadd.f32 0.0, %v363
    %v365 = vpop.f32.mrb[0].mxu0
    %v366 = vpop.f32.mrb[0].mxu0
    %v367 = vadd.f32 0.0, %v366
    %v368 = vpop.f32.mrb[0].mxu0
    %369 = vdwg.mxu0
    %v370 = vadd.f32 %v129, %v308
    %v371 = vadd.f32 %v130, %v311
    %v372 = vadd.f32 %v131, %v316
    %v373 = vadd.f32 %v132, %v319
    %v374 = vadd.f32 %v133, %v324
    %v375 = vadd.f32 %v134, %v327
    %v376 = vadd.f32 %v135, %v332
    %v377 = vadd.f32 %v136, %v335
    %v378 = vadd.f32 %v137, %v340
    %v379 = vadd.f32 %v138, %v343
    %v380 = vadd.f32 %v139, %v348
    %v381 = vadd.f32 %v140, %v351
    %v382 = vadd.f32 %v141, %v356
    %v383 = vadd.f32 %v142, %v359
    %v384 = vadd.f32 %v143, %v364
    %v385 = vadd.f32 %v144, %v367
    %386 = vst [vmem:[#allocation2] sm:$0xff] %v370
    %387 = vst [vmem:[#allocation2 + $0x8] sm:$0xff] %v371
    %388 = vst [vmem:[#allocation2 + $0x10] sm:$0xff] %v372
    %389 = vst [vmem:[#allocation2 + $0x18] sm:$0xff] %v373
    %390 = vst [vmem:[#allocation2 + $0x20] sm:$0xff] %v374
    %391 = vst [vmem:[#allocation2 + $0x28] sm:$0xff] %v375
    %392 = vst [vmem:[#allocation2 + $0x30] sm:$0xff] %v376
    %393 = vst [vmem:[#allocation2 + $0x38] sm:$0xff] %v377
    %394 = vst [vmem:[#allocation2 + $0x40] sm:$0xff] %v378
    %395 = vst [vmem:[#allocation2 + $0x48] sm:$0xff] %v379
    %396 = vst [vmem:[#allocation2 + $0x50] sm:$0xff] %v380
    %397 = vst [vmem:[#allocation2 + $0x58] sm:$0xff] %v381
    %398 = vst [vmem:[#allocation2 + $0x60] sm:$0xff] %v382
    %399 = vst [vmem:[#allocation2 + $0x68] sm:$0xff] %v383
    %400 = vst [vmem:[#allocation2 + $0x70] sm:$0xff] %v384
    %401 = vst [vmem:[#allocation2 + $0x78] sm:$0xff] %v385
  $region37: #{gcn_forward.5} parent=0 // pred_fallthru
    _
  // Predicated region
  $region38: #{gcn_forward.5} parent=0 // pred_check
    %p402 = pneg %p98
  $region39: #{gcn_forward.5} parent=0 // pred_check_branch
    %404 = sbr.rel (%p402) target = $region41
  $region40: #{gcn_forward.5} parent=0 // pred_region
    %v405 = vld [vmem:[#allocation2] sm:$0xff]
    %v406 = vld [vmem:[#allocation2 + $0x8] sm:$0xff]
    %v407 = vld [vmem:[#allocation2 + $0x10] sm:$0xff]
    %v408 = vld [vmem:[#allocation2 + $0x18] sm:$0xff]
    %v409 = vld [vmem:[#allocation2 + $0x20] sm:$0xff]
    %v410 = vld [vmem:[#allocation2 + $0x28] sm:$0xff]
    %v411 = vld [vmem:[#allocation2 + $0x30] sm:$0xff]
    %v412 = vld [vmem:[#allocation2 + $0x38] sm:$0xff]
    %v413 = vld [vmem:[#allocation2 + $0x40] sm:$0xff]
    %v414 = vld [vmem:[#allocation2 + $0x48] sm:$0xff]
    %v415 = vld [vmem:[#allocation2 + $0x50] sm:$0xff]
    %v416 = vld [vmem:[#allocation2 + $0x58] sm:$0xff]
    %v417 = vld [vmem:[#allocation2 + $0x60] sm:$0xff]
    %v418 = vld [vmem:[#allocation2 + $0x68] sm:$0xff]
    %v419 = vld [vmem:[#allocation2 + $0x70] sm:$0xff]
    %v420 = vld [vmem:[#allocation2 + $0x78] sm:$0xff]
    %v421 = vld [vmem:[%s4] sm:$0x1]
    %v423 = vlaneseq
    %v424 = vshrl.u32 %v423, 7
    %v425 = vsub.s32 0, %v424
    %v426 = vrot.slane %v421, %v425
    %v428 = vadd.f32 %v405, %v426
    %v429 = vadd.f32 %v406, %v426
    %v430 = vadd.f32 %v407, %v426
    %v431 = vadd.f32 %v408, %v426
    %v432 = vadd.f32 %v409, %v426
    %v433 = vadd.f32 %v410, %v426
    %v434 = vadd.f32 %v411, %v426
    %v435 = vadd.f32 %v412, %v426
    %v436 = vadd.f32 %v413, %v426
    %v437 = vadd.f32 %v414, %v426
    %v438 = vadd.f32 %v415, %v426
    %v439 = vadd.f32 %v416, %v426
    %v440 = vadd.f32 %v417, %v426
    %v441 = vadd.f32 %v418, %v426
    %v442 = vadd.f32 %v419, %v426
    %v443 = vadd.f32 %v420, %v426
    %v444 = vmax.f32 %v428, 0.0
    %v445 = vmax.f32 %v429, 0.0
    %v446 = vmax.f32 %v430, 0.0
    %v447 = vmax.f32 %v431, 0.0
    %v448 = vmax.f32 %v432, 0.0
    %v449 = vmax.f32 %v433, 0.0
    %v450 = vmax.f32 %v434, 0.0
    %v451 = vmax.f32 %v435, 0.0
    %v452 = vmax.f32 %v436, 0.0
    %v453 = vmax.f32 %v437, 0.0
    %v454 = vmax.f32 %v438, 0.0
    %v455 = vmax.f32 %v439, 0.0
    %v456 = vmax.f32 %v440, 0.0
    %v457 = vmax.f32 %v441, 0.0
    %v458 = vmax.f32 %v442, 0.0
    %v459 = vmax.f32 %v443, 0.0
    %v460 = vpack.c.bf16 %v445, %v444
    %v461 = vpack.c.bf16 %v447, %v446
    %v462 = vpack.c.bf16 %v449, %v448
    %v463 = vpack.c.bf16 %v451, %v450
    %v464 = vpack.c.bf16 %v453, %v452
    %v465 = vpack.c.bf16 %v455, %v454
    %v466 = vpack.c.bf16 %v457, %v456
    %v467 = vpack.c.bf16 %v459, %v458
    %s468 = smul.u32 0, 128
    %s469 = sshra.s32 %s468, 7
    %s470 = sand.u32 %s468, 127
    %s471 = smul.addr %s469, 4
    %s472 = scalar_lea.vmem %s5, %s471
    %v473 = vld [vmem:[%s472] sm:$0xf]
    %v474 = vld [vmem:[%s472 + $0x4] sm:$0xf]
    %v475 = vld [vmem:[#allocation3] sm:$0xff]
    %v476 = vld [vmem:[#allocation3 + $0x8] sm:$0xff]
    %v479 = vunpack.c.l.b16 %v473
    %v480 = vunpack.c.l.b16 %v474
    %v481 = vpack.c.b16 %v480, %v479
    %483 = vmatprep.subr.bf16.mxu0 0
    %484 = vmatpush1.bf16.msra.mxu0 %v460
    %485 = vmatprep.subr.bf16.mxu0 0
    %486 = vmatpush1.bf16.msra.mxu0 %v461
    %487 = vmatprep.subr.bf16.mxu0 0
    %488 = vmatpush1.bf16.msra.mxu0 %v462
    %489 = vmatprep.subr.bf16.mxu0 0
    %490 = vmatpush1.bf16.msra.mxu0 %v463
    %491 = vmatprep.subr.bf16.mxu0 0
    %492 = vmatpush1.bf16.msra.mxu0 %v464
    %493 = vmatprep.subr.bf16.mxu0 0
    %494 = vmatpush1.bf16.msra.mxu0 %v465
    %495 = vmatprep.subr.bf16.mxu0 0
    %496 = vmatpush1.bf16.msra.mxu0 %v466
    %497 = vmatprep.subr.bf16.mxu0 0
    %498 = vmatpush1.bf16.msra.mxu0 %v467
    %499 = vmatprep.subr.bf16.mxu0 0
    %500 = vmatpush1.bf16.msra.mxu0 0
    %501 = vmatprep.subr.bf16.mxu0 0
    %502 = vmatpush1.bf16.msra.mxu0 0
    %503 = vmatprep.subr.bf16.mxu0 0
    %504 = vmatpush1.bf16.msra.mxu0 0
    %505 = vmatprep.subr.bf16.mxu0 0
    %506 = vmatpush1.bf16.msra.mxu0 0
    %507 = vmatprep.subr.bf16.mxu0 0
    %508 = vmatpush1.bf16.msra.mxu0 0
    %509 = vmatprep.subr.bf16.mxu0 0
    %510 = vmatpush1.bf16.msra.mxu0 0
    %511 = vmatprep.subr.bf16.mxu0 0
    %512 = vmatpush1.bf16.msra.mxu0 0
    %513 = vmatprep.subr.bf16.mxu0 0
    %514 = vmatpush1.bf16.msra.mxu0 0
    %515 = vmatprep.mubr.bf16.mxu0 0
    %516 = vmatmul.mubr.bf16.gmra.mrb[0].mxu0 %v481
    %v517 = vpop.f32.mrb[0].mxu0
    %v518 = vadd.f32 0.0, %v517
    %v519 = vpop.f32.mrb[0].mxu0
    %v520 = vpop.f32.mrb[0].mxu0
    %v521 = vadd.f32 0.0, %v520
    %v522 = vpop.f32.mrb[0].mxu0
    %523 = vdwg.mxu0
    %v524 = vadd.f32 %v475, %v518
    %v525 = vadd.f32 %v476, %v521
    %526 = vst [vmem:[#allocation3] sm:$0xff] %v524
    %527 = vst [vmem:[#allocation3 + $0x8] sm:$0xff] %v525
  $region41: #{gcn_forward.5} parent=0 // pred_fallthru
    _
  // Predicated region
  $region42: #{gcn_forward.5} parent=0 // pred_check
    _
  $region43: #{gcn_forward.5} parent=0 // pred_check_branch
    %529 = sbr.rel (%p99) target = $region45
  $region44: #{gcn_forward.5} parent=0 // pred_region
    %v530 = vld [vmem:[#allocation3] sm:$0xff]
    %v531 = vld [vmem:[#allocation3 + $0x8] sm:$0xff]
    %v532 = vpack.c.bf16 %v531, %v530
    %v533 = vld [vmem:[%s6] sm:$0xf]
    %v534 = vld [vmem:[%s6 + $0x4] sm:$0xf]
    %v535 = vld [vmem:[%s6 + $0x8] sm:$0xf]
    %v536 = vld [vmem:[%s6 + $0xc] sm:$0xf]
    %v537 = vld [vmem:[%s6 + $0x10] sm:$0xf]
    %v538 = vld [vmem:[%s6 + $0x14] sm:$0xf]
    %v539 = vld [vmem:[%s6 + $0x18] sm:$0xf]
    %v540 = vld [vmem:[%s6 + $0x1c] sm:$0xf]
    %v541 = vld [vmem:[%s6 + $0x20] sm:$0xf]
    %v542 = vld [vmem:[%s6 + $0x24] sm:$0xf]
    %v543 = vld [vmem:[%s6 + $0x28] sm:$0xf]
    %v544 = vld [vmem:[%s6 + $0x2c] sm:$0xf]
    %v545 = vld [vmem:[%s6 + $0x30] sm:$0xf]
    %v546 = vld [vmem:[%s6 + $0x34] sm:$0xf]
    %v547 = vld [vmem:[%s6 + $0x38] sm:$0xf]
    %v548 = vld [vmem:[%s6 + $0x3c] sm:$0xf]
    %v549 = vld [vmem:[%s7] sm:$0x1]
    %v551 = vlaneseq
    %v552 = vshrl.u32 %v551, 7
    %v553 = vsub.s32 0, %v552
    %v554 = vrot.slane %v549, %v553
    %v572 = vunpack.c.l.b16 %v533
    %v573 = vunpack.c.l.b16 %v534
    %v574 = vunpack.c.l.b16 %v535
    %v575 = vunpack.c.l.b16 %v536
    %v576 = vunpack.c.l.b16 %v537
    %v577 = vunpack.c.l.b16 %v538
    %v578 = vunpack.c.l.b16 %v539
    %v579 = vunpack.c.l.b16 %v540
    %v580 = vunpack.c.l.b16 %v541
    %v581 = vunpack.c.l.b16 %v542
    %v582 = vunpack.c.l.b16 %v543
    %v583 = vunpack.c.l.b16 %v544
    %v584 = vunpack.c.l.b16 %v545
    %v585 = vunpack.c.l.b16 %v546
    %v586 = vunpack.c.l.b16 %v547
    %v587 = vunpack.c.l.b16 %v548
    %v588 = vpack.c.b16 %v573, %v572
    %v589 = vpack.c.b16 %v575, %v574
    %v590 = vpack.c.b16 %v577, %v576
    %v591 = vpack.c.b16 %v579, %v578
    %v592 = vpack.c.b16 %v581, %v580
    %v593 = vpack.c.b16 %v583, %v582
    %v594 = vpack.c.b16 %v585, %v584
    %v595 = vpack.c.b16 %v587, %v586
    %604 = vmatprep.subr.bf16.mxu0 0
    %605 = vmatpush1.bf16.msra.mxu0 %v588
    %606 = vmatprep.subr.bf16.mxu0 0
    %607 = vmatpush1.bf16.msra.mxu0 %v589
    %608 = vmatprep.subr.bf16.mxu0 0
    %609 = vmatpush1.bf16.msra.mxu0 %v590
    %610 = vmatprep.subr.bf16.mxu0 0
    %611 = vmatpush1.bf16.msra.mxu0 %v591
    %612 = vmatprep.subr.bf16.mxu0 0
    %613 = vmatpush1.bf16.msra.mxu0 %v592
    %614 = vmatprep.subr.bf16.mxu0 0
    %615 = vmatpush1.bf16.msra.mxu0 %v593
    %616 = vmatprep.subr.bf16.mxu0 0
    %617 = vmatpush1.bf16.msra.mxu0 %v594
    %618 = vmatprep.subr.bf16.mxu0 0
    %619 = vmatpush1.bf16.msra.mxu0 %v595
    %620 = vmatprep.subr.bf16.mxu0 0
    %621 = vmatpush1.bf16.msra.mxu0 0
    %622 = vmatprep.subr.bf16.mxu0 0
    %623 = vmatpush1.bf16.msra.mxu0 0
    %624 = vmatprep.subr.bf16.mxu0 0
    %625 = vmatpush1.bf16.msra.mxu0 0
    %626 = vmatprep.subr.bf16.mxu0 0
    %627 = vmatpush1.bf16.msra.mxu0 0
    %628 = vmatprep.subr.bf16.mxu0 0
    %629 = vmatpush1.bf16.msra.mxu0 0
    %630 = vmatprep.subr.bf16.mxu0 0
    %631 = vmatpush1.bf16.msra.mxu0 0
    %632 = vmatprep.subr.bf16.mxu0 0
    %633 = vmatpush1.bf16.msra.mxu0 0
    %634 = vmatprep.subr.bf16.mxu0 0
    %635 = vmatpush1.bf16.msra.mxu0 0
    %636 = vmatprep.mubr.bf16.mxu0 0
    %637 = vmatmul.mubr.bf16.gmra.mrb[0].mxu0 %v532
    %v638 = vpop.f32.mrb[0].mxu0
    %v639 = vadd.f32 %v554, %v638
    %v640 = vpop.f32.mrb[0].mxu0
    %v641 = vpop.f32.mrb[0].mxu0
    %v642 = vadd.f32 %v554, %v641
    %v643 = vpop.f32.mrb[0].mxu0
    %644 = vdwg.mxu0
    %645 = vst [vmem:[%s8] sm:$0xff] %v639
    %646 = vst [vmem:[%s8 + $0x8] sm:$0xff] %v642
  $region45: #{gcn_forward.5} parent=0 // pred_fallthru
    _
  // Predicated region
  $region46: #{gcn_forward.5} parent=0 // pred_check
    _
  $region47: #{gcn_forward.5} parent=0 // pred_check_branch
    %648 = sbr.rel (0) target = $region49
  $region48: #{gcn_forward.5} parent=0 // pred_region
    _
  $region49: #{gcn_forward.5} parent=0 // pred_fallthru
    _
  // Predicated region
  $region50: #{gcn_forward.5} parent=0 // pred_check
    _
  $region51: #{gcn_forward.5} parent=0 // pred_check_branch
    %650 = sbr.rel (0) target = $region53
  $region52: #{gcn_forward.5} parent=0 // pred_region
    _
  $region53: #{gcn_forward.5} parent=0 // pred_fallthru
    _

// kernel: gcn_forward.4
$region0: #{gcn_forward.4}
  #allocation0 [shape = 'u32[]', space=smem, size = 0x4, offset = 0x4, fixed_abs, tag = 'smem constant byte address 0x4 - core index']
  #allocation1 [shape = 'u32[144,128]{1,0:T(1,128)}', space=vmem, size = 0x12000, scoped, tag = 'internal scratch']
  #allocation2 [shape = 'f32[128,128]{1,0:T(8,128)}', space=vmem, size = 0x10000, scoped, tag = 'scratch operand']
  #allocation3 [shape = 's32[1]{0}', space=sflag, size = 0x4, scoped, tag = 'scoped memory for gcn_forward.4']
  #allocation4 [shape = 's32[1,1]{1,0:T(1,128)S(6)}', space=smem, size = 0x200, scoped, tag = 'prefetched SMEM operand 0']
  #allocation5 [shape = 's32[1]{0:T(128)S(6)}', space=smem, size = 0x200, scoped, tag = 'prefetched SMEM operand 1']
  %s0 = inlined_call_operand.<no memory space> [shape: s32[1,1], index: 0, kind: input, shape index: {}]
  %s1 = inlined_call_operand.<no memory space> [shape: s32[1], index: 1, kind: input, shape index: {}]
  %s2 = inlined_call_operand.vmem [shape: bf16[128,128], index: 2, kind: input, shape index: {}]
  %s3 = inlined_call_operand.vmem [shape: bf16[128,128], index: 3, kind: input, shape index: {}]
  %s4 = inlined_call_operand.vmem [shape: f32[1,128], index: 4, kind: input, shape index: {}]
  %s5 = inlined_call_operand.vmem [shape: bf16[128,128], index: 5, kind: input, shape index: {}]
  %s6 = inlined_call_operand.vmem [shape: bf16[128,128], index: 6, kind: output, shape index: {}]
  %s7 = sld [smem:[#allocation0]]
  $region38: #{gcn_forward.4} parent=0
    _
  %s9 = ssub.s32 1, %s7
  %s10 = scalar_select 0, %s9, %s7
  %11 = sst [smem:[#allocation4]] %s0
  %12 = sst [smem:[#allocation5]] %s1
  // Predicated region
  $region2: #{gcn_forward.4} parent=0 // pred_check
    _
  $region3: #{gcn_forward.4} parent=0 // pred_check_branch
    %14 = sbr.rel (0) target = $region5
  $region4: #{gcn_forward.4} parent=0 // pred_region
    %s15 = sadd.s32 0, 0
    %s16 = smul.u32 %s15, 128
    %s17 = sadd.s32 %s16, 0
    %s18 = sld [smem:[#allocation4 + %s17]]
    %p19 = scmp.lt.s32.totalorder %s18, 0
    %s20 = scalar_select %p19, %s18, 0
    %s21 = smul.addr %s20, 4
    %s22 = scalar_lea.vmem %s2, %s21
    %s23 = sadd.s32 0, 0
    %s24 = smul.u32 %s23, 128
    %s25 = sadd.s32 %s24, 0
    %s26 = sld [smem:[#allocation4 + %s25]]
  $region5: #{gcn_forward.4} parent=0 // pred_fallthru
    _
  // Predicated region
  $region6: #{gcn_forward.4} parent=0 // pred_check
    _
  $region7: #{gcn_forward.4} parent=0 // pred_check_branch
    %28 = sbr.rel (0) target = $region9
  $region8: #{gcn_forward.4} parent=0 // pred_region
    %s29 = sadd.s32 0, 0
    %s30 = smul.u32 %s29, 128
    %s31 = sadd.s32 %s30, 0
    %s32 = sld [smem:[#allocation4 + %s31]]
    %s33 = smul.u32 16, %s32
    %p34 = scmp.lt.s32.totalorder %s33, 15
    %s35 = scalar_select %p34, %s33, 15
    %s36 = smul.addr %s35, 4
    %s37 = scalar_lea.vmem %s3, %s36
    %s38 = sadd.s32 0, 0
    %s39 = smul.u32 %s38, 128
    %s40 = sadd.s32 %s39, 0
    %s41 = sld [smem:[#allocation4 + %s40]]
    %s42 = smul.u32 16, %s41
  $region9: #{gcn_forward.4} parent=0 // pred_fallthru
    _
  // Predicated region
  $region10: #{gcn_forward.4} parent=0 // pred_check
    _
  $region11: #{gcn_forward.4} parent=0 // pred_check_branch
    %44 = sbr.rel (0) target = $region13
  $region12: #{gcn_forward.4} parent=0 // pred_region
    _
  $region13: #{gcn_forward.4} parent=0 // pred_fallthru
    _
  // Predicated region
  $region14: #{gcn_forward.4} parent=0 // pred_check
    _
  $region15: #{gcn_forward.4} parent=0 // pred_check_branch
    %46 = sbr.rel (0) target = $region17
  $region16: #{gcn_forward.4} parent=0 // pred_region
    _
  $region17: #{gcn_forward.4} parent=0 // pred_fallthru
    _
  %s47 = sadd.s32 0, 0
  %s48 = smul.u32 %s47, 128
  %s49 = sadd.s32 %s48, 0
  %s50 = sld [smem:[#allocation4 + %s49]]
  %p51 = scmp.lt.s32.totalorder %s50, 0
  %s52 = scalar_select %p51, %s50, 0
  %s53 = smul.addr %s52, 4
  %s54 = scalar_lea.vmem %s2, %s53
  %s55 = sadd.s32 0, 0
  %s56 = smul.u32 %s55, 128
  %s57 = sadd.s32 %s56, 0
  %s58 = sld [smem:[#allocation4 + %s57]]
  %s59 = smul.u32 16, %s58
  %p60 = scmp.lt.s32.totalorder %s59, 15
  %s61 = scalar_select %p60, %s59, 15
  %s62 = smul.addr %s61, 4
  %s63 = scalar_lea.vmem %s3, %s62
  %s64 = sadd.s32 0, 0
  %s65 = smul.u32 %s64, 128
  %s66 = sadd.s32 %s65, 0
  %s67 = sld [smem:[#allocation4 + %s66]]
  %p68 = scmp.lt.s32.totalorder %s67, 0
  %s69 = scalar_select %p68, %s67, 0
  %s70 = smul.addr %s69, 4
  %s71 = scalar_lea.vmem %s2, %s70
  %s72 = sadd.s32 0, 0
  %s73 = smul.u32 %s72, 128
  %s74 = sadd.s32 %s73, 0
  %s75 = sld [smem:[#allocation4 + %s74]]
  %s76 = sadd.s32 0, 0
  %s77 = smul.u32 %s76, 128
  %s78 = sadd.s32 %s77, 0
  %s79 = sld [smem:[#allocation4 + %s78]]
  %s80 = smul.u32 16, %s79
  %p81 = scmp.lt.s32.totalorder %s80, 15
  %s82 = scalar_select %p81, %s80, 15
  %s83 = smul.addr %s82, 4
  %s84 = scalar_lea.vmem %s3, %s83
  %s85 = sadd.s32 0, 0
  %s86 = smul.u32 %s85, 128
  %s87 = sadd.s32 %s86, 0
  %s88 = sld [smem:[#allocation4 + %s87]]
  %s89 = smul.u32 16, %s88
  %p91 = scmp.eq.s32.totalorder 0, 0
  // Predicated region
  $region18: #{gcn_forward.4} parent=0 // pred_check
    %p92 = pneg %p91
  $region19: #{gcn_forward.4} parent=0 // pred_check_branch
    %94 = sbr.rel (%p92) target = $region21
  $region20: #{gcn_forward.4} parent=0 // pred_region
    %95 = vst [vmem:[#allocation2] sm:$0xff] 0.0
    %96 = vst [vmem:[#allocation2 + $0x8] sm:$0xff] 0.0
    %97 = vst [vmem:[#allocation2 + $0x10] sm:$0xff] 0.0
    %98 = vst [vmem:[#allocation2 + $0x18] sm:$0xff] 0.0
    %99 = vst [vmem:[#allocation2 + $0x20] sm:$0xff] 0.0
    %100 = vst [vmem:[#allocation2 + $0x28] sm:$0xff] 0.0
    %101 = vst [vmem:[#allocation2 + $0x30] sm:$0xff] 0.0
    %102 = vst [vmem:[#allocation2 + $0x38] sm:$0xff] 0.0
    %103 = vst [vmem:[#allocation2 + $0x40] sm:$0xff] 0.0
    %104 = vst [vmem:[#allocation2 + $0x48] sm:$0xff] 0.0
    %105 = vst [vmem:[#allocation2 + $0x50] sm:$0xff] 0.0
    %106 = vst [vmem:[#allocation2 + $0x58] sm:$0xff] 0.0
    %107 = vst [vmem:[#allocation2 + $0x60] sm:$0xff] 0.0
    %108 = vst [vmem:[#allocation2 + $0x68] sm:$0xff] 0.0
    %109 = vst [vmem:[#allocation2 + $0x70] sm:$0xff] 0.0
    %110 = vst [vmem:[#allocation2 + $0x78] sm:$0xff] 0.0
  $region21: #{gcn_forward.4} parent=0 // pred_fallthru
    _
  %s111 = sld [smem:[#allocation5]]
  %p112 = scmp.lt.s32.totalorder 0, %s111
  // Predicated region
  $region22: #{gcn_forward.4} parent=0 // pred_check
    %p113 = pneg %p112
  $region23: #{gcn_forward.4} parent=0 // pred_check_branch
    %115 = sbr.rel (%p113) target = $region25
  $region24: #{gcn_forward.4} parent=0 // pred_region
    %v116 = vld [vmem:[#allocation2] sm:$0xff]
    %v117 = vld [vmem:[#allocation2 + $0x8] sm:$0xff]
    %v118 = vld [vmem:[#allocation2 + $0x10] sm:$0xff]
    %v119 = vld [vmem:[#allocation2 + $0x18] sm:$0xff]
    %v120 = vld [vmem:[#allocation2 + $0x20] sm:$0xff]
    %v121 = vld [vmem:[#allocation2 + $0x28] sm:$0xff]
    %v122 = vld [vmem:[#allocation2 + $0x30] sm:$0xff]
    %v123 = vld [vmem:[#allocation2 + $0x38] sm:$0xff]
    %v124 = vld [vmem:[#allocation2 + $0x40] sm:$0xff]
    %v125 = vld [vmem:[#allocation2 + $0x48] sm:$0xff]
    %v126 = vld [vmem:[#allocation2 + $0x50] sm:$0xff]
    %v127 = vld [vmem:[#allocation2 + $0x58] sm:$0xff]
    %v128 = vld [vmem:[#allocation2 + $0x60] sm:$0xff]
    %v129 = vld [vmem:[#allocation2 + $0x68] sm:$0xff]
    %v130 = vld [vmem:[#allocation2 + $0x70] sm:$0xff]
    %v131 = vld [vmem:[#allocation2 + $0x78] sm:$0xff]
    %v132 = vld [vmem:[%s71] sm:$0xf]
    %v133 = vld [vmem:[%s71 + $0x4] sm:$0xf]
    %v134 = vld [vmem:[%s71 + $0x8] sm:$0xf]
    %v135 = vld [vmem:[%s71 + $0xc] sm:$0xf]
    %v136 = vld [vmem:[%s71 + $0x10] sm:$0xf]
    %v137 = vld [vmem:[%s71 + $0x14] sm:$0xf]
    %v138 = vld [vmem:[%s71 + $0x18] sm:$0xf]
    %v139 = vld [vmem:[%s71 + $0x1c] sm:$0xf]
    %v140 = vld [vmem:[%s71 + $0x20] sm:$0xf]
    %v141 = vld [vmem:[%s71 + $0x24] sm:$0xf]
    %v142 = vld [vmem:[%s71 + $0x28] sm:$0xf]
    %v143 = vld [vmem:[%s71 + $0x2c] sm:$0xf]
    %v144 = vld [vmem:[%s71 + $0x30] sm:$0xf]
    %v145 = vld [vmem:[%s71 + $0x34] sm:$0xf]
    %v146 = vld [vmem:[%s71 + $0x38] sm:$0xf]
    %v147 = vld [vmem:[%s71 + $0x3c] sm:$0xf]
    %v148 = vld [vmem:[%s84] sm:$0xf]
    %v149 = vld [vmem:[%s84 + $0x4] sm:$0xf]
    %v150 = vld [vmem:[%s84 + $0x8] sm:$0xf]
    %v151 = vld [vmem:[%s84 + $0xc] sm:$0xf]
    %v152 = vld [vmem:[%s84 + $0x10] sm:$0xf]
    %v153 = vld [vmem:[%s84 + $0x14] sm:$0xf]
    %v154 = vld [vmem:[%s84 + $0x18] sm:$0xf]
    %v155 = vld [vmem:[%s84 + $0x1c] sm:$0xf]
    %v156 = vld [vmem:[%s84 + $0x20] sm:$0xf]
    %v157 = vld [vmem:[%s84 + $0x24] sm:$0xf]
    %v158 = vld [vmem:[%s84 + $0x28] sm:$0xf]
    %v159 = vld [vmem:[%s84 + $0x2c] sm:$0xf]
    %v160 = vld [vmem:[%s84 + $0x30] sm:$0xf]
    %v161 = vld [vmem:[%s84 + $0x34] sm:$0xf]
    %v162 = vld [vmem:[%s84 + $0x38] sm:$0xf]
    %v163 = vld [vmem:[%s84 + $0x3c] sm:$0xf]
    %v180 = vunpack.c.l.b16 %v132
    %v181 = vunpack.c.l.b16 %v133
    %v182 = vunpack.c.l.b16 %v134
    %v183 = vunpack.c.l.b16 %v135
    %v184 = vunpack.c.l.b16 %v136
    %v185 = vunpack.c.l.b16 %v137
    %v186 = vunpack.c.l.b16 %v138
    %v187 = vunpack.c.l.b16 %v139
    %v188 = vunpack.c.l.b16 %v140
    %v189 = vunpack.c.l.b16 %v141
    %v190 = vunpack.c.l.b16 %v142
    %v191 = vunpack.c.l.b16 %v143
    %v192 = vunpack.c.l.b16 %v144
    %v193 = vunpack.c.l.b16 %v145
    %v194 = vunpack.c.l.b16 %v146
    %v195 = vunpack.c.l.b16 %v147
    %v196 = vpack.c.b16 %v181, %v180
    %v197 = vpack.c.b16 %v183, %v182
    %v198 = vpack.c.b16 %v185, %v184
    %v199 = vpack.c.b16 %v187, %v186
    %v200 = vpack.c.b16 %v189, %v188
    %v201 = vpack.c.b16 %v191, %v190
    %v202 = vpack.c.b16 %v193, %v192
    %v203 = vpack.c.b16 %v195, %v194
    %v228 = vunpack.c.l.b16 %v148
    %v229 = vunpack.c.l.b16 %v149
    %v230 = vunpack.c.l.b16 %v150
    %v231 = vunpack.c.l.b16 %v151
    %v232 = vunpack.c.l.b16 %v152
    %v233 = vunpack.c.l.b16 %v153
    %v234 = vunpack.c.l.b16 %v154
    %v235 = vunpack.c.l.b16 %v155
    %v236 = vunpack.c.l.b16 %v156
    %v237 = vunpack.c.l.b16 %v157
    %v238 = vunpack.c.l.b16 %v158
    %v239 = vunpack.c.l.b16 %v159
    %v240 = vunpack.c.l.b16 %v160
    %v241 = vunpack.c.l.b16 %v161
    %v242 = vunpack.c.l.b16 %v162
    %v243 = vunpack.c.l.b16 %v163
    %v244 = vpack.c.b16 %v229, %v228
    %v245 = vpack.c.b16 %v231, %v230
    %v246 = vpack.c.b16 %v233, %v232
    %v247 = vpack.c.b16 %v235, %v234
    %v248 = vpack.c.b16 %v237, %v236
    %v249 = vpack.c.b16 %v239, %v238
    %v250 = vpack.c.b16 %v241, %v240
    %v251 = vpack.c.b16 %v243, %v242
    %260 = vmatprep.subr.bf16.mxu0 0
    %261 = vmatpush1.bf16.msra.mxu0 %v244
    %262 = vmatprep.subr.bf16.mxu0 0
    %263 = vmatpush1.bf16.msra.mxu0 %v245
    %264 = vmatprep.subr.bf16.mxu0 0
    %265 = vmatpush1.bf16.msra.mxu0 %v246
    %266 = vmatprep.subr.bf16.mxu0 0
    %267 = vmatpush1.bf16.msra.mxu0 %v247
    %268 = vmatprep.subr.bf16.mxu0 0
    %269 = vmatpush1.bf16.msra.mxu0 %v248
    %270 = vmatprep.subr.bf16.mxu0 0
    %271 = vmatpush1.bf16.msra.mxu0 %v249
    %272 = vmatprep.subr.bf16.mxu0 0
    %273 = vmatpush1.bf16.msra.mxu0 %v250
    %274 = vmatprep.subr.bf16.mxu0 0
    %275 = vmatpush1.bf16.msra.mxu0 %v251
    %276 = vmatprep.subr.bf16.mxu0 0
    %277 = vmatpush1.bf16.msra.mxu0 0
    %278 = vmatprep.subr.bf16.mxu0 0
    %279 = vmatpush1.bf16.msra.mxu0 0
    %280 = vmatprep.subr.bf16.mxu0 0
    %281 = vmatpush1.bf16.msra.mxu0 0
    %282 = vmatprep.subr.bf16.mxu0 0
    %283 = vmatpush1.bf16.msra.mxu0 0
    %284 = vmatprep.subr.bf16.mxu0 0
    %285 = vmatpush1.bf16.msra.mxu0 0
    %286 = vmatprep.subr.bf16.mxu0 0
    %287 = vmatpush1.bf16.msra.mxu0 0
    %288 = vmatprep.subr.bf16.mxu0 0
    %289 = vmatpush1.bf16.msra.mxu0 0
    %290 = vmatprep.subr.bf16.mxu0 0
    %291 = vmatpush1.bf16.msra.mxu0 0
    %292 = vmatprep.mubr.bf16.mxu0 0
    %293 = vmatmul.mubr.bf16.gmra.mrb[0].mxu0 %v196
    %v294 = vpop.f32.mrb[0].mxu0
    %v295 = vadd.f32 0.0, %v294
    %v296 = vpop.f32.mrb[0].mxu0
    %v297 = vpop.f32.mrb[0].mxu0
    %v298 = vadd.f32 0.0, %v297
    %v299 = vpop.f32.mrb[0].mxu0
    %300 = vmatprep.mubr.bf16.mxu0 0
    %301 = vmatmul.mubr.bf16.gmra.mrb[0].mxu0 %v197
    %v302 = vpop.f32.mrb[0].mxu0
    %v303 = vadd.f32 0.0, %v302
    %v304 = vpop.f32.mrb[0].mxu0
    %v305 = vpop.f32.mrb[0].mxu0
    %v306 = vadd.f32 0.0, %v305
    %v307 = vpop.f32.mrb[0].mxu0
    %308 = vmatprep.mubr.bf16.mxu0 0
    %309 = vmatmul.mubr.bf16.gmra.mrb[0].mxu0 %v198
    %v310 = vpop.f32.mrb[0].mxu0
    %v311 = vadd.f32 0.0, %v310
    %v312 = vpop.f32.mrb[0].mxu0
    %v313 = vpop.f32.mrb[0].mxu0
    %v314 = vadd.f32 0.0, %v313
    %v315 = vpop.f32.mrb[0].mxu0
    %316 = vmatprep.mubr.bf16.mxu0 0
    %317 = vmatmul.mubr.bf16.gmra.mrb[0].mxu0 %v199
    %v318 = vpop.f32.mrb[0].mxu0
    %v319 = vadd.f32 0.0, %v318
    %v320 = vpop.f32.mrb[0].mxu0
    %v321 = vpop.f32.mrb[0].mxu0
    %v322 = vadd.f32 0.0, %v321
    %v323 = vpop.f32.mrb[0].mxu0
    %324 = vmatprep.mubr.bf16.mxu0 0
    %325 = vmatmul.mubr.bf16.gmra.mrb[0].mxu0 %v200
    %v326 = vpop.f32.mrb[0].mxu0
    %v327 = vadd.f32 0.0, %v326
    %v328 = vpop.f32.mrb[0].mxu0
    %v329 = vpop.f32.mrb[0].mxu0
    %v330 = vadd.f32 0.0, %v329
    %v331 = vpop.f32.mrb[0].mxu0
    %332 = vmatprep.mubr.bf16.mxu0 0
    %333 = vmatmul.mubr.bf16.gmra.mrb[0].mxu0 %v201
    %v334 = vpop.f32.mrb[0].mxu0
    %v335 = vadd.f32 0.0, %v334
    %v336 = vpop.f32.mrb[0].mxu0
    %v337 = vpop.f32.mrb[0].mxu0
    %v338 = vadd.f32 0.0, %v337
    %v339 = vpop.f32.mrb[0].mxu0
    %340 = vmatprep.mubr.bf16.mxu0 0
    %341 = vmatmul.mubr.bf16.gmra.mrb[0].mxu0 %v202
    %v342 = vpop.f32.mrb[0].mxu0
    %v343 = vadd.f32 0.0, %v342
    %v344 = vpop.f32.mrb[0].mxu0
    %v345 = vpop.f32.mrb[0].mxu0
    %v346 = vadd.f32 0.0, %v345
    %v347 = vpop.f32.mrb[0].mxu0
    %348 = vmatprep.mubr.bf16.mxu0 0
    %349 = vmatmul.mubr.bf16.gmra.mrb[0].mxu0 %v203
    %v350 = vpop.f32.mrb[0].mxu0
    %v351 = vadd.f32 0.0, %v350
    %v352 = vpop.f32.mrb[0].mxu0
    %v353 = vpop.f32.mrb[0].mxu0
    %v354 = vadd.f32 0.0, %v353
    %v355 = vpop.f32.mrb[0].mxu0
    %356 = vdwg.mxu0
    %v357 = vadd.f32 %v116, %v295
    %v358 = vadd.f32 %v117, %v298
    %v359 = vadd.f32 %v118, %v303
    %v360 = vadd.f32 %v119, %v306
    %v361 = vadd.f32 %v120, %v311
    %v362 = vadd.f32 %v121, %v314
    %v363 = vadd.f32 %v122, %v319
    %v364 = vadd.f32 %v123, %v322
    %v365 = vadd.f32 %v124, %v327
    %v366 = vadd.f32 %v125, %v330
    %v367 = vadd.f32 %v126, %v335
    %v368 = vadd.f32 %v127, %v338
    %v369 = vadd.f32 %v128, %v343
    %v370 = vadd.f32 %v129, %v346
    %v371 = vadd.f32 %v130, %v351
    %v372 = vadd.f32 %v131, %v354
    %373 = vst [vmem:[#allocation2] sm:$0xff] %v357
    %374 = vst [vmem:[#allocation2 + $0x8] sm:$0xff] %v358
    %375 = vst [vmem:[#allocation2 + $0x10] sm:$0xff] %v359
    %376 = vst [vmem:[#allocation2 + $0x18] sm:$0xff] %v360
    %377 = vst [vmem:[#allocation2 + $0x20] sm:$0xff] %v361
    %378 = vst [vmem:[#allocation2 + $0x28] sm:$0xff] %v362
    %379 = vst [vmem:[#allocation2 + $0x30] sm:$0xff] %v363
    %380 = vst [vmem:[#allocation2 + $0x38] sm:$0xff] %v364
    %381 = vst [vmem:[#allocation2 + $0x40] sm:$0xff] %v365
    %382 = vst [vmem:[#allocation2 + $0x48] sm:$0xff] %v366
    %383 = vst [vmem:[#allocation2 + $0x50] sm:$0xff] %v367
    %384 = vst [vmem:[#allocation2 + $0x58] sm:$0xff] %v368
    %385 = vst [vmem:[#allocation2 + $0x60] sm:$0xff] %v369
    %386 = vst [vmem:[#allocation2 + $0x68] sm:$0xff] %v370
    %387 = vst [vmem:[#allocation2 + $0x70] sm:$0xff] %v371
    %388 = vst [vmem:[#allocation2 + $0x78] sm:$0xff] %v372
  $region25: #{gcn_forward.4} parent=0 // pred_fallthru
    _
  // Predicated region
  $region26: #{gcn_forward.4} parent=0 // pred_check
    %p389 = pneg %p91
  $region27: #{gcn_forward.4} parent=0 // pred_check_branch
    %391 = sbr.rel (%p389) target = $region29
  $region28: #{gcn_forward.4} parent=0 // pred_region
    %v392 = vld [vmem:[#allocation2] sm:$0xff]
    %v393 = vld [vmem:[#allocation2 + $0x8] sm:$0xff]
    %v394 = vld [vmem:[#allocation2 + $0x10] sm:$0xff]
    %v395 = vld [vmem:[#allocation2 + $0x18] sm:$0xff]
    %v396 = vld [vmem:[#allocation2 + $0x20] sm:$0xff]
    %v397 = vld [vmem:[#allocation2 + $0x28] sm:$0xff]
    %v398 = vld [vmem:[#allocation2 + $0x30] sm:$0xff]
    %v399 = vld [vmem:[#allocation2 + $0x38] sm:$0xff]
    %v400 = vld [vmem:[#allocation2 + $0x40] sm:$0xff]
    %v401 = vld [vmem:[#allocation2 + $0x48] sm:$0xff]
    %v402 = vld [vmem:[#allocation2 + $0x50] sm:$0xff]
    %v403 = vld [vmem:[#allocation2 + $0x58] sm:$0xff]
    %v404 = vld [vmem:[#allocation2 + $0x60] sm:$0xff]
    %v405 = vld [vmem:[#allocation2 + $0x68] sm:$0xff]
    %v406 = vld [vmem:[#allocation2 + $0x70] sm:$0xff]
    %v407 = vld [vmem:[#allocation2 + $0x78] sm:$0xff]
    %v408 = vld [vmem:[%s4] sm:$0x1]
    %v410 = vlaneseq
    %v411 = vshrl.u32 %v410, 7
    %v412 = vsub.s32 0, %v411
    %v413 = vrot.slane %v408, %v412
    %v415 = vadd.f32 %v392, %v413
    %v416 = vadd.f32 %v393, %v413
    %v417 = vadd.f32 %v394, %v413
    %v418 = vadd.f32 %v395, %v413
    %v419 = vadd.f32 %v396, %v413
    %v420 = vadd.f32 %v397, %v413
    %v421 = vadd.f32 %v398, %v413
    %v422 = vadd.f32 %v399, %v413
    %v423 = vadd.f32 %v400, %v413
    %v424 = vadd.f32 %v401, %v413
    %v425 = vadd.f32 %v402, %v413
    %v426 = vadd.f32 %v403, %v413
    %v427 = vadd.f32 %v404, %v413
    %v428 = vadd.f32 %v405, %v413
    %v429 = vadd.f32 %v406, %v413
    %v430 = vadd.f32 %v407, %v413
    %v431 = vmax.f32 %v415, 0.0
    %v432 = vmax.f32 %v416, 0.0
    %v433 = vmax.f32 %v417, 0.0
    %v434 = vmax.f32 %v418, 0.0
    %v435 = vmax.f32 %v419, 0.0
    %v436 = vmax.f32 %v420, 0.0
    %v437 = vmax.f32 %v421, 0.0
    %v438 = vmax.f32 %v422, 0.0
    %v439 = vmax.f32 %v423, 0.0
    %v440 = vmax.f32 %v424, 0.0
    %v441 = vmax.f32 %v425, 0.0
    %v442 = vmax.f32 %v426, 0.0
    %v443 = vmax.f32 %v427, 0.0
    %v444 = vmax.f32 %v428, 0.0
    %v445 = vmax.f32 %v429, 0.0
    %v446 = vmax.f32 %v430, 0.0
    %v447 = vpack.c.bf16 %v432, %v431
    %v448 = vpack.c.bf16 %v434, %v433
    %v449 = vpack.c.bf16 %v436, %v435
    %v450 = vpack.c.bf16 %v438, %v437
    %v451 = vpack.c.bf16 %v440, %v439
    %v452 = vpack.c.bf16 %v442, %v441
    %v453 = vpack.c.bf16 %v444, %v443
    %v454 = vpack.c.bf16 %v446, %v445
    %v455 = vld [vmem:[%s5] sm:$0xf]
    %v456 = vld [vmem:[%s5 + $0x4] sm:$0xf]
    %v457 = vld [vmem:[%s5 + $0x8] sm:$0xf]
    %v458 = vld [vmem:[%s5 + $0xc] sm:$0xf]
    %v459 = vld [vmem:[%s5 + $0x10] sm:$0xf]
    %v460 = vld [vmem:[%s5 + $0x14] sm:$0xf]
    %v461 = vld [vmem:[%s5 + $0x18] sm:$0xf]
    %v462 = vld [vmem:[%s5 + $0x1c] sm:$0xf]
    %v463 = vld [vmem:[%s5 + $0x20] sm:$0xf]
    %v464 = vld [vmem:[%s5 + $0x24] sm:$0xf]
    %v465 = vld [vmem:[%s5 + $0x28] sm:$0xf]
    %v466 = vld [vmem:[%s5 + $0x2c] sm:$0xf]
    %v467 = vld [vmem:[%s5 + $0x30] sm:$0xf]
    %v468 = vld [vmem:[%s5 + $0x34] sm:$0xf]
    %v469 = vld [vmem:[%s5 + $0x38] sm:$0xf]
    %v470 = vld [vmem:[%s5 + $0x3c] sm:$0xf]
    %v487 = vunpack.c.l.b16 %v455
    %v488 = vunpack.c.l.b16 %v456
    %v489 = vunpack.c.l.b16 %v457
    %v490 = vunpack.c.l.b16 %v458
    %v491 = vunpack.c.l.b16 %v459
    %v492 = vunpack.c.l.b16 %v460
    %v493 = vunpack.c.l.b16 %v461
    %v494 = vunpack.c.l.b16 %v462
    %v495 = vunpack.c.l.b16 %v463
    %v496 = vunpack.c.l.b16 %v464
    %v497 = vunpack.c.l.b16 %v465
    %v498 = vunpack.c.l.b16 %v466
    %v499 = vunpack.c.l.b16 %v467
    %v500 = vunpack.c.l.b16 %v468
    %v501 = vunpack.c.l.b16 %v469
    %v502 = vunpack.c.l.b16 %v470
    %v503 = vpack.c.b16 %v488, %v487
    %v504 = vpack.c.b16 %v490, %v489
    %v505 = vpack.c.b16 %v492, %v491
    %v506 = vpack.c.b16 %v494, %v493
    %v507 = vpack.c.b16 %v496, %v495
    %v508 = vpack.c.b16 %v498, %v497
    %v509 = vpack.c.b16 %v500, %v499
    %v510 = vpack.c.b16 %v502, %v501
    %519 = vmatprep.subr.bf16.mxu0 0
    %520 = vmatpush1.bf16.msra.mxu0 %v503
    %521 = vmatprep.subr.bf16.mxu0 0
    %522 = vmatpush1.bf16.msra.mxu0 %v504
    %523 = vmatprep.subr.bf16.mxu0 0
    %524 = vmatpush1.bf16.msra.mxu0 %v505
    %525 = vmatprep.subr.bf16.mxu0 0
    %526 = vmatpush1.bf16.msra.mxu0 %v506
    %527 = vmatprep.subr.bf16.mxu0 0
    %528 = vmatpush1.bf16.msra.mxu0 %v507
    %529 = vmatprep.subr.bf16.mxu0 0
    %530 = vmatpush1.bf16.msra.mxu0 %v508
    %531 = vmatprep.subr.bf16.mxu0 0
    %532 = vmatpush1.bf16.msra.mxu0 %v509
    %533 = vmatprep.subr.bf16.mxu0 0
    %534 = vmatpush1.bf16.msra.mxu0 %v510
    %535 = vmatprep.subr.bf16.mxu0 0
    %536 = vmatpush1.bf16.msra.mxu0 0
    %537 = vmatprep.subr.bf16.mxu0 0
    %538 = vmatpush1.bf16.msra.mxu0 0
    %539 = vmatprep.subr.bf16.mxu0 0
    %540 = vmatpush1.bf16.msra.mxu0 0
    %541 = vmatprep.subr.bf16.mxu0 0
    %542 = vmatpush1.bf16.msra.mxu0 0
    %543 = vmatprep.subr.bf16.mxu0 0
    %544 = vmatpush1.bf16.msra.mxu0 0
    %545 = vmatprep.subr.bf16.mxu0 0
    %546 = vmatpush1.bf16.msra.mxu0 0
    %547 = vmatprep.subr.bf16.mxu0 0
    %548 = vmatpush1.bf16.msra.mxu0 0
    %549 = vmatprep.subr.bf16.mxu0 0
    %550 = vmatpush1.bf16.msra.mxu0 0
    %551 = vmatprep.mubr.bf16.mxu0 0
    %552 = vmatmul.mubr.bf16.gmra.mrb[0].mxu0 %v447
    %v553 = vpop.f32.mrb[0].mxu0
    %v554 = vadd.f32 0.0, %v553
    %v555 = vpop.f32.mrb[0].mxu0
    %v556 = vpop.f32.mrb[0].mxu0
    %v557 = vadd.f32 0.0, %v556
    %v558 = vpop.f32.mrb[0].mxu0
    %559 = vmatprep.mubr.bf16.mxu0 0
    %560 = vmatmul.mubr.bf16.gmra.mrb[0].mxu0 %v448
    %v561 = vpop.f32.mrb[0].mxu0
    %v562 = vadd.f32 0.0, %v561
    %v563 = vpop.f32.mrb[0].mxu0
    %v564 = vpop.f32.mrb[0].mxu0
    %v565 = vadd.f32 0.0, %v564
    %v566 = vpop.f32.mrb[0].mxu0
    %567 = vmatprep.mubr.bf16.mxu0 0
    %568 = vmatmul.mubr.bf16.gmra.mrb[0].mxu0 %v449
    %v569 = vpop.f32.mrb[0].mxu0
    %v570 = vadd.f32 0.0, %v569
    %v571 = vpop.f32.mrb[0].mxu0
    %v572 = vpop.f32.mrb[0].mxu0
    %v573 = vadd.f32 0.0, %v572
    %v574 = vpop.f32.mrb[0].mxu0
    %575 = vmatprep.mubr.bf16.mxu0 0
    %576 = vmatmul.mubr.bf16.gmra.mrb[0].mxu0 %v450
    %v577 = vpop.f32.mrb[0].mxu0
    %v578 = vadd.f32 0.0, %v577
    %v579 = vpop.f32.mrb[0].mxu0
    %v580 = vpop.f32.mrb[0].mxu0
    %v581 = vadd.f32 0.0, %v580
    %v582 = vpop.f32.mrb[0].mxu0
    %583 = vmatprep.mubr.bf16.mxu0 0
    %584 = vmatmul.mubr.bf16.gmra.mrb[0].mxu0 %v451
    %v585 = vpop.f32.mrb[0].mxu0
    %v586 = vadd.f32 0.0, %v585
    %v587 = vpop.f32.mrb[0].mxu0
    %v588 = vpop.f32.mrb[0].mxu0
    %v589 = vadd.f32 0.0, %v588
    %v590 = vpop.f32.mrb[0].mxu0
    %591 = vmatprep.mubr.bf16.mxu0 0
    %592 = vmatmul.mubr.bf16.gmra.mrb[0].mxu0 %v452
    %v593 = vpop.f32.mrb[0].mxu0
    %v594 = vadd.f32 0.0, %v593
    %v595 = vpop.f32.mrb[0].mxu0
    %v596 = vpop.f32.mrb[0].mxu0
    %v597 = vadd.f32 0.0, %v596
    %v598 = vpop.f32.mrb[0].mxu0
    %599 = vmatprep.mubr.bf16.mxu0 0
    %600 = vmatmul.mubr.bf16.gmra.mrb[0].mxu0 %v453
    %v601 = vpop.f32.mrb[0].mxu0
    %v602 = vadd.f32 0.0, %v601
    %v603 = vpop.f32.mrb[0].mxu0
    %v604 = vpop.f32.mrb[0].mxu0
    %v605 = vadd.f32 0.0, %v604
    %v606 = vpop.f32.mrb[0].mxu0
    %607 = vmatprep.mubr.bf16.mxu0 0
    %608 = vmatmul.mubr.bf16.gmra.mrb[0].mxu0 %v454
    %v609 = vpop.f32.mrb[0].mxu0
    %v610 = vadd.f32 0.0, %v609
    %v611 = vpop.f32.mrb[0].mxu0
    %v612 = vpop.f32.mrb[0].mxu0
    %v613 = vadd.f32 0.0, %v612
    %v614 = vpop.f32.mrb[0].mxu0
    %615 = vdwg.mxu0
    %v616 = vpack.c.bf16 %v557, %v554
    %v617 = vpack.c.bf16 %v565, %v562
    %v618 = vpack.c.bf16 %v573, %v570
    %v619 = vpack.c.bf16 %v581, %v578
    %v620 = vpack.c.bf16 %v589, %v586
    %v621 = vpack.c.bf16 %v597, %v594
    %v622 = vpack.c.bf16 %v605, %v602
    %v623 = vpack.c.bf16 %v613, %v610
    %v632 = vunpack.c.l.b16 %v616
    %v633 = vunpack.c.h.b16 %v616
    %v634 = vunpack.c.l.b16 %v617
    %v635 = vunpack.c.h.b16 %v617
    %v636 = vunpack.c.l.b16 %v618
    %v637 = vunpack.c.h.b16 %v618
    %v638 = vunpack.c.l.b16 %v619
    %v639 = vunpack.c.h.b16 %v619
    %v640 = vunpack.c.l.b16 %v620
    %v641 = vunpack.c.h.b16 %v620
    %v642 = vunpack.c.l.b16 %v621
    %v643 = vunpack.c.h.b16 %v621
    %v644 = vunpack.c.l.b16 %v622
    %v645 = vunpack.c.h.b16 %v622
    %v646 = vunpack.c.l.b16 %v623
    %v647 = vunpack.c.h.b16 %v623
    %v648 = vpack.c.b16 %v632, %v632
    %v649 = vpack.c.b16 %v633, %v633
    %v650 = vpack.c.b16 %v634, %v634
    %v651 = vpack.c.b16 %v635, %v635
    %v652 = vpack.c.b16 %v636, %v636
    %v653 = vpack.c.b16 %v637, %v637
    %v654 = vpack.c.b16 %v638, %v638
    %v655 = vpack.c.b16 %v639, %v639
    %v656 = vpack.c.b16 %v640, %v640
    %v657 = vpack.c.b16 %v641, %v641
    %v658 = vpack.c.b16 %v642, %v642
    %v659 = vpack.c.b16 %v643, %v643
    %v660 = vpack.c.b16 %v644, %v644
    %v661 = vpack.c.b16 %v645, %v645
    %v662 = vpack.c.b16 %v646, %v646
    %v663 = vpack.c.b16 %v647, %v647
    %680 = vst [vmem:[%s6] sm:$0xf] %v648
    %681 = vst [vmem:[%s6 + $0x4] sm:$0xf] %v649
    %682 = vst [vmem:[%s6 + $0x8] sm:$0xf] %v650
    %683 = vst [vmem:[%s6 + $0xc] sm:$0xf] %v651
    %684 = vst [vmem:[%s6 + $0x10] sm:$0xf] %v652
    %685 = vst [vmem:[%s6 + $0x14] sm:$0xf] %v653
    %686 = vst [vmem:[%s6 + $0x18] sm:$0xf] %v654
    %687 = vst [vmem:[%s6 + $0x1c] sm:$0xf] %v655
    %688 = vst [vmem:[%s6 + $0x20] sm:$0xf] %v656
    %689 = vst [vmem:[%s6 + $0x24] sm:$0xf] %v657
    %690 = vst [vmem:[%s6 + $0x28] sm:$0xf] %v658
    %691 = vst [vmem:[%s6 + $0x2c] sm:$0xf] %v659
    %692 = vst [vmem:[%s6 + $0x30] sm:$0xf] %v660
    %693 = vst [vmem:[%s6 + $0x34] sm:$0xf] %v661
    %694 = vst [vmem:[%s6 + $0x38] sm:$0xf] %v662
    %695 = vst [vmem:[%s6 + $0x3c] sm:$0xf] %v663
  $region29: #{gcn_forward.4} parent=0 // pred_fallthru
    _
  // Predicated region
  $region30: #{gcn_forward.4} parent=0 // pred_check
    _
  $region31: #{gcn_forward.4} parent=0 // pred_check_branch
    %697 = sbr.rel (0) target = $region33
  $region32: #{gcn_forward.4} parent=0 // pred_region
    _
  $region33: #{gcn_forward.4} parent=0 // pred_fallthru
    _
  // Predicated region
  $region34: #{gcn_forward.4} parent=0 // pred_check
    _
  $region35: #{gcn_forward.4} parent=0 // pred_check_branch
    %699 = sbr.rel (0) target = $region37
  $region36: #{gcn_forward.4} parent=0 // pred_region
    _
  $region37: #{gcn_forward.4} parent=0 // pred_fallthru
    _

</llo_original>
